<compile_context>
chip_gen: v7x
topology: tpu7x:2x2x1
jax: 0.10.0
libtpu: 0.0.40
codegen_flags: <defaults>
</compile_context>

<pallas_src>
import numpy as np
import jax
import jax.numpy as jnp
from jax.experimental import pallas as pl
from jax.experimental.pallas import tpu as pltpu

BN_EPS = 1e-5      # torch BatchNorm default eps
ADD_EPS = 1e-12    # Add module eps
_INV_SQRT2 = 0.7071067811865476


def _recip(x):
    # EUP reciprocal seed (~12 bits) + one Newton step (~24 bits): f32-accurate enough,
    # keeps divides off the binding VALU slot.
    r = pl.reciprocal(x, approx=True)
    return r * (2.0 - x * r)


def _erf_f32(x):
    # Abramowitz & Stegun 7.1.26 (|err| < 1.5e-7); the divide is an EUP reciprocal + 1 NR step.
    a1, a2, a3, a4, a5 = 0.254829592, -0.284496736, 1.421413741, -1.453152027, 1.061405429
    p = 0.3275911
    ax = jnp.abs(x)
    t = _recip(1.0 + p * ax)
    poly = ((((a5 * t + a4) * t + a3) * t + a2) * t + a1) * t
    y = 1.0 - poly * jnp.exp(-ax * ax)
    return jnp.where(x >= 0, y, -y)


def _gelu_exact(z):
    # Matches torch nn.GELU() (erf-based, approximate='none').
    return 0.5 * z * (1.0 + _erf_f32(z * _INV_SQRT2))


def _make_projector_kernel(Wp, Wh, NQO, NKO):
    # Static tap offsets.  q branch: flattened padded map, tap (ky,kx) -> lane shift ky*Wp+kx.
    # k/v branch: parity plane p=(ky%2)*2+(kx%2), lane shift (ky//2)*Wh+(kx//2).
    q_offs = [ky * Wp + kx for ky in range(3) for kx in range(3)]
    kv_planes = [(ky % 2) * 2 + (kx % 2) for ky in range(3) for kx in range(3)]
    kv_offs = [(ky // 2) * Wh + (kx // 2) for ky in range(3) for kx in range(3)]
    assert q_offs[4] == Wp + 1   # center tap doubles as the residual-token slice

    def kernel(xq_ref, xkv_ref, kmadd_ref, dw_ref, w1_ref, b1_ref,
               sx_ref, bn1b_ref, hones_ref, hscale_ref, out_ref):
        # ---- fused depthwise 3x3 sweep: each tap read feeds q (or both k AND v) accumulators ----
        accq = xq_ref[0, :, 0:NQO] * dw_ref[0, 0]          # (R, NQO) * (R, 1)
        tap0 = xkv_ref[0, 0, :, 0:NKO]                     # (R, NKO), read once for k AND v
        acck = tap0 * dw_ref[1, 0]
        accv = tap0 * dw_ref[2, 0]
        xres = None
        for t in range(1, 9):
            oq = q_offs[t]
            tq = xq_ref[0, :, oq:oq + NQO]
            if t == 4:
                xres = tq                                  # residual == center-tap slice, reused
            accq = accq + tq * dw_ref[0, t]
            pidx, ok = kv_planes[t], kv_offs[t]
            tkv = xkv_ref[0, pidx, :, ok:ok + NKO]
            acck = acck + tkv * dw_ref[1, t]
            accv = accv + tkv * dw_ref[2, t]

        # ---- 1x1 conv (BatchNorm2d pre-folded into w1/b1 on the host) + exact GELU ----
        def pw_gelu(acc, i):
            z = jnp.dot(w1_ref[i], acc, preferred_element_type=jnp.float32) + b1_ref[i]
            return _gelu_exact(z)

        q = pw_gelu(accq, 0)                               # (R, NQO)
        k = pw_gelu(acck, 1)                               # (R, NKO)
        v = pw_gelu(accv, 2)                               # (R, NKO)

        # ---- MHSA (efficient attention), all (batch,head) blocks via full-width MXU matmuls ----
        # q softmax over channels within each (batch, head) group, per token column.
        # NOTE: junk padded q-token columns flow through exp/softmax but stay isolated per column
        #       and are sliced off on the host; they never touch valid outputs.
        qm = jnp.max(q, axis=0, keepdims=True)             # any per-column shift is valid
        qe = jnp.exp(q - qm)
        qden = jnp.dot(hones_ref[...], qe, preferred_element_type=jnp.float32)
        qs = qe * _recip(qden)
        # k softmax over valid kv tokens per row; junk tokens carry -1e30 additively (exp -> 0).
        km = k + kmadd_ref[...]
        kmax = jnp.max(km, axis=1, keepdims=True)
        ke = jnp.exp(km - kmax)
        ks = ke * _recip(jnp.sum(ke, axis=1, keepdims=True))
        # ctxT[e,d] = sum_m v[e,m]*ks[d,m]; hscale = (batch,head) block mask * addw0*bn1_scale
        # (host-folded) zeroes cross-block terms and applies the epilogue scale on the tiny tensor.
        # TODO(synk): for very large L produce ks pre-transposed so this matmul carries no
        #             transposed big operand (verify via pl.lower_as_mlir).
        ctxT = jax.lax.dot_general(v, ks, (((1,), (1,)), ((), ())),
                                   preferred_element_type=jnp.float32) * hscale_ref[...]
        mhsa = jnp.dot(ctxT, qs, preferred_element_type=jnp.float32)       # (R, NQO)

        # ---- Add + BatchNorm1d epilogue (scales pre-folded: one FMA + one add per element) ----
        out_ref[0] = (mhsa + xres * sx_ref[...] + bn1b_ref[...]).astype(out_ref.dtype)

    return kernel


def _pick_bt(B, C, max_bt=8):
    # Pack Bt batch items onto the sublane axis so Bt*C fills the 8 f32 sublanes.
    for bt in range(1, min(B, max_bt) + 1):
        if B % bt == 0 and (bt * C) % 8 == 0:
            return bt
    return 1


def projector_forward(x, params, heads):
    """x: (B, C, L) with L a perfect square.  Returns (B, C, L) float32 (eval-mode BN)."""
    x = x.astype(jnp.float32)
    B, C, L = x.shape
    s = int(round(L ** 0.5))
    assert s * s == L and C % heads == 0
    H = W = s
    Hp = Wp = s + 2

    Bt = _pick_bt(B, C)
    G, R = B // Bt, Bt * C                                 # grid steps, sublane rows per step

    maps = x.reshape(B, C, H, W)
    xp = jnp.pad(maps, ((0, 0), (0, 0), (1, 1), (1, 1)))   # zero pad for 3x3 'same'

    # stride-1 (q) branch: flattened padded map; taps are static lane shifts
    NQO = H * Wp
    NP2 = Hp * Wp + 2
    xq = jnp.pad(xp.reshape(B, C, Hp * Wp), ((0, 0), (0, 0), (0, NP2 - Hp * Wp)))
    xq = xq.reshape(G, R, NP2)                             # Bt batch items stacked on sublanes

    # stride-2 (k/v) branch: 2x2 parity planes; taps are static lane shifts
    Hp2, Wp2 = Hp + (Hp % 2), Wp + (Wp % 2)
    Ho, Wo = (H + 1) // 2, (W + 1) // 2
    Hh, Wh = Hp2 // 2, Wp2 // 2
    xpe = jnp.pad(xp, ((0, 0), (0, 0), (0, Hp2 - Hp), (0, Wp2 - Wp)))
    planes = xpe.reshape(B, C, Hh, 2, Wh, 2).transpose(0, 3, 5, 1, 2, 4)   # (B,2,2,C,Hh,Wh)
    NKO = Ho * Wh
    NK2 = Hh * Wh + 2
    xkv = jnp.pad(planes.reshape(B, 4, C, Hh * Wh), ((0, 0), (0, 0), (0, 0), (0, 2)))
    xkv = xkv.reshape(G, Bt, 4, C, NK2).transpose(0, 2, 1, 3, 4).reshape(G, 4, R, NK2)

    # additive kv validity mask (junk half-plane columns -> -1e30, exp underflows to exactly 0)
    kmadd = jnp.where((jnp.arange(NKO) % Wh) < Wo, 0.0, -1e30).astype(jnp.float32).reshape(1, NKO)

    # ---------------- host-side parameter folding / re-layout ----------------
    tile_r = lambda a: jnp.tile(a, (Bt,))                  # per-channel -> per-row (Bt*C)
    dw = params["dw_w"].reshape(3, C, 9).transpose(0, 2, 1)
    dw = jnp.tile(dw, (1, 1, Bt))[..., None]                               # (3, 9, R, 1)
    # BatchNorm2d folded into the 1x1 conv: w1_eff = w1 * bn2_scale(in); b1_eff = w1@bn2_shift + b1
    bn2s = params["bn2_gamma"] / jnp.sqrt(params["bn2_var"] + BN_EPS)
    bn2b = params["bn2_beta"] - params["bn2_mean"] * bn2s
    w1_eff = params["pw_w"] * bn2s[:, None, :]
    b1_eff = jnp.einsum("ioc,ic->io", params["pw_w"], bn2b) + params["pw_b"]
    eyeB = jnp.eye(Bt, dtype=jnp.float32)
    w1 = jnp.stack([jnp.kron(eyeB, w1_eff[i]) for i in range(3)])          # (3, R, R) block-diag
    b1 = jnp.stack([tile_r(b1_eff[i]) for i in range(3)])[..., None]       # (3, R, 1)
    # Add + BatchNorm1d folded into ctx scale / residual scale / shift
    wr = jnp.maximum(params["add_w"], 0.0)
    addw = wr / (jnp.sum(wr) + ADD_EPS)
    bn1s = params["bn1_gamma"] / jnp.sqrt(params["bn1_var"] + BN_EPS)
    bn1b = params["bn1_beta"] - params["bn1_mean"] * bn1s
    s_m = tile_r(addw[0] * bn1s)                                           # (R,)
    s_x = tile_r(addw[1] * bn1s)[:, None]                                  # (R, 1)
    bn1b_t = tile_r(bn1b)[:, None]                                         # (R, 1)
    # block-diagonal (batch x head) masks on the tiny (R, R) context
    gid = jnp.arange(R) // (C // heads)
    hones = (gid[:, None] == gid[None, :]).astype(jnp.float32)             # (R, R)
    hscale = hones * s_m[:, None]                                          # ctxT rows pre-scaled

    kernel = _make_projector_kernel(Wp, Wh, NQO, NKO)

    out_pad = pl.pallas_call(
        kernel,
        out_shape=jax.ShapeDtypeStruct((G, R, NQO), jnp.float32),
        grid=(G,),
        in_specs=[
            pl.BlockSpec((1, R, NP2), lambda g: (g, 0, 0)),            # padded q map (flat)
            pl.BlockSpec((1, 4, R, NK2), lambda g: (g, 0, 0, 0)),      # kv parity planes
            pl.BlockSpec((1, NKO), lambda g: (0, 0)),                  # additive kv mask
            pl.BlockSpec((3, 9, R, 1), lambda g: (0, 0, 0, 0)),        # depthwise taps
            pl.BlockSpec((3, R, R), lambda g: (0, 0, 0)),              # 1x1 weights (BN2 folded)
            pl.BlockSpec((3, R, 1), lambda g: (0, 0, 0)),              # 1x1 bias (BN2 folded)
            pl.BlockSpec((R, 1), lambda g: (0, 0)),                    # residual scale addw1*bn1s
            pl.BlockSpec((R, 1), lambda g: (0, 0)),                    # bn1 shift
            pl.BlockSpec((R, R), lambda g: (0, 0)),                    # block-ones (softmax sums)
            pl.BlockSpec((R, R), lambda g: (0, 0)),                    # ctx mask * addw0*bn1s
        ],
        out_specs=pl.BlockSpec((1, R, NQO), lambda g: (g, 0, 0)),
        compiler_params=pltpu.CompilerParams(
            dimension_semantics=("parallel",),
            vmem_limit_bytes=64 * 1024 * 1024,                         # headroom for larger L
        ),
    )(xq, xkv, kmadd, dw, w1, b1, s_x, bn1b_t, hones, hscale)

    # drop the padded junk columns of the flattened token space (cheap XLA slice)
    return out_pad.reshape(B, C, H, Wp)[:, :, :, :W].reshape(B, C, L)


def projector_reference(x, params, heads):
    """Pure-JAX reference (eval-mode BN), mirrors the PyTorch forward."""
    B, C, L = x.shape
    s = int(round(L ** 0.5))
    maps = x.reshape(B, C, s, s)
    bn2s = params["bn2_gamma"] / jnp.sqrt(params["bn2_var"] + BN_EPS)
    bn2b = params["bn2_beta"] - params["bn2_mean"] * bn2s

    def branch(i, stride):
        y = jax.lax.conv_general_dilated(
            maps, params["dw_w"][i], (stride, stride), ((1, 1), (1, 1)),
            dimension_numbers=("NCHW", "OIHW", "NCHW"), feature_group_count=C)
        y = y * bn2s[i][None, :, None, None] + bn2b[i][None, :, None, None]
        y = jnp.einsum("bihw,oi->bohw", y, params["pw_w"][i]) \
            + params["pw_b"][i][None, :, None, None]
        return jax.nn.gelu(y, approximate=False)

    q, k, v = branch(0, 1), branch(1, 2), branch(2, 2)
    ft = lambda t: t.reshape(B, C, -1).transpose(0, 2, 1)
    q, k, v = ft(q), ft(k), ft(v)
    dh = C // heads
    outs = []
    for h in range(heads):
        qh = jax.nn.softmax(q[:, :, h * dh:(h + 1) * dh], axis=2)
        kh = jax.nn.softmax(k[:, :, h * dh:(h + 1) * dh], axis=1)
        vh = v[:, :, h * dh:(h + 1) * dh]
        ctx = jnp.einsum("bnd,bne->bde", kh, vh)
        outs.append(jnp.einsum("bqd,bde->bqe", qh, ctx))
    mhsa = jnp.concatenate(outs, axis=2).transpose(0, 2, 1)     # (B, C, L)
    wr = jnp.maximum(params["add_w"], 0.0)
    addw = wr / (jnp.sum(wr) + ADD_EPS)
    o = addw[0] * mhsa + addw[1] * x
    bn1s = params["bn1_gamma"] / jnp.sqrt(params["bn1_var"] + BN_EPS)
    bn1b = params["bn1_beta"] - params["bn1_mean"] * bn1s
    return o * bn1s[None, :, None] + bn1b[None, :, None]


def _make_params(key, C):
    ks = jax.random.split(key, 11)
    return dict(
        dw_w=0.3 * jax.random.normal(ks[0], (3, C, 1, 3, 3), dtype=jnp.float32),
        bn2_gamma=1.0 + 0.1 * jax.random.normal(ks[1], (3, C), dtype=jnp.float32),
        bn2_beta=0.1 * jax.random.normal(ks[2], (3, C), dtype=jnp.float32),
        bn2_mean=0.1 * jax.random.normal(ks[3], (3, C), dtype=jnp.float32),
        bn2_var=1.0 + jnp.abs(0.1 * jax.random.normal(ks[4], (3, C), dtype=jnp.float32)),
        pw_w=0.3 * jax.random.normal(ks[5], (3, C, C), dtype=jnp.float32),   # (Cout, Cin)
        pw_b=0.1 * jax.random.normal(ks[6], (3, C), dtype=jnp.float32),
        add_w=jnp.ones((2,), dtype=jnp.float32),                              # torch init
        bn1_gamma=1.0 + 0.1 * jax.random.normal(ks[7], (C,), dtype=jnp.float32),
        bn1_beta=0.1 * jax.random.normal(ks[8], (C,), dtype=jnp.float32),
        bn1_mean=0.1 * jax.random.normal(ks[9], (C,), dtype=jnp.float32),
        bn1_var=1.0 + jnp.abs(0.1 * jax.random.normal(ks[10], (C,), dtype=jnp.float32)),
    )


if __name__ == "__main__":
    key = jax.random.PRNGKey(0)
    # CLFormer Projector configs: dim=4 (sublane-packed, Bt=2) and dim=8 (Bt=1), 4x4 maps.
    for (B, C, L, HEADS) in [(2, 4, 16, 2), (2, 8, 16, 2)]:
        kx, kp, key = jax.random.split(key, 3)
        x = jax.random.normal(kx, (B, C, L), dtype=jnp.float32)
        params = _make_params(kp, C)
        out = jax.block_until_ready(projector_forward(x, params, HEADS))
        ref = jax.block_until_ready(projector_reference(x, params, HEADS))
        assert out.shape == (B, C, L)
        np.testing.assert_allclose(np.asarray(out), np.asarray(ref), rtol=1e-4, atol=1e-4)
    print("KERNEL_OK")
</pallas_src>

<mosaic_0001>
module attributes {stable_mosaic.version = 11 : i64} {
  func.func @kernel(%arg0: i32, %arg1: memref<1x8x38xf32, #tpu.memory_space<vmem>>, %arg2: memref<1x4x8x11xf32, #tpu.memory_space<vmem>>, %arg3: memref<1x6xf32, #tpu.memory_space<vmem>>, %arg4: memref<3x9x8x1xf32, #tpu.memory_space<vmem>>, %arg5: memref<3x8x8xf32, #tpu.memory_space<vmem>>, %arg6: memref<3x8x1xf32, #tpu.memory_space<vmem>>, %arg7: memref<8x1xf32, #tpu.memory_space<vmem>>, %arg8: memref<8x1xf32, #tpu.memory_space<vmem>>, %arg9: memref<8x8xf32, #tpu.memory_space<vmem>>, %arg10: memref<8x8xf32, #tpu.memory_space<vmem>>, %arg11: memref<1x8x24xf32, #tpu.memory_space<vmem>>) attributes {dimension_semantics = [#tpu.dimension_semantics<parallel>], iteration_bounds = array<i64: 1>, scalar_prefetch = 0 : i64, scratch_operands = 0 : i64, tpu.core_type = #tpu.core_type<tc>, window_params = [{transform_indices = @transform_0, window_bounds = array<i64: 1, 8, 38>}, {transform_indices = @transform_1, window_bounds = array<i64: 1, 4, 8, 11>}, {pipeline_mode = #tpu.pipeline_mode<synchronous>, transform_indices = @transform_2, window_bounds = array<i64: 1, 6>}, {pipeline_mode = #tpu.pipeline_mode<synchronous>, transform_indices = @transform_3, window_bounds = array<i64: 3, 9, 8, 1>}, {pipeline_mode = #tpu.pipeline_mode<synchronous>, transform_indices = @transform_4, window_bounds = array<i64: 3, 8, 8>}, {pipeline_mode = #tpu.pipeline_mode<synchronous>, transform_indices = @transform_5, window_bounds = array<i64: 3, 8, 1>}, {pipeline_mode = #tpu.pipeline_mode<synchronous>, transform_indices = @transform_6, window_bounds = array<i64: 8, 1>}, {pipeline_mode = #tpu.pipeline_mode<synchronous>, transform_indices = @transform_7, window_bounds = array<i64: 8, 1>}, {pipeline_mode = #tpu.pipeline_mode<synchronous>, transform_indices = @transform_8, window_bounds = array<i64: 8, 8>}, {pipeline_mode = #tpu.pipeline_mode<synchronous>, transform_indices = @transform_9, window_bounds = array<i64: 8, 8>}, {transform_indices = @transform_10, window_bounds = array<i64: 1, 8, 24>}]} {
    %c0 = arith.constant 0 : index
    %c0_0 = arith.constant 0 : index
    %c0_1 = arith.constant 0 : index
    %0 = vector.load %arg1[%c0, %c0_0, %c0_1] : memref<1x8x38xf32, #tpu.memory_space<vmem>>, vector<1x8x24xf32>
    %1 = vector.shape_cast %0 : vector<1x8x24xf32> to vector<8x24xf32>
    %c0_2 = arith.constant 0 : index
    %c0_3 = arith.constant 0 : index
    %c0_4 = arith.constant 0 : index
    %c0_5 = arith.constant 0 : index
    %2 = vector.load %arg4[%c0_2, %c0_3, %c0_4, %c0_5] : memref<3x9x8x1xf32, #tpu.memory_space<vmem>>, vector<1x1x8x1xf32>
    %3 = vector.shape_cast %2 : vector<1x1x8x1xf32> to vector<8x1xf32>
    %4 = vector.broadcast %3 : vector<8x1xf32> to vector<8x24xf32>
    %5 = arith.mulf %1, %4 : vector<8x24xf32>
    %c0_6 = arith.constant 0 : index
    %c0_7 = arith.constant 0 : index
    %c0_8 = arith.constant 0 : index
    %c0_9 = arith.constant 0 : index
    %6 = vector.load %arg2[%c0_6, %c0_7, %c0_8, %c0_9] : memref<1x4x8x11xf32, #tpu.memory_space<vmem>>, vector<1x1x8x6xf32>
    %7 = vector.shape_cast %6 : vector<1x1x8x6xf32> to vector<8x6xf32>
    %c1 = arith.constant 1 : index
    %c0_10 = arith.constant 0 : index
    %c0_11 = arith.constant 0 : index
    %c0_12 = arith.constant 0 : index
    %8 = vector.load %arg4[%c1, %c0_10, %c0_11, %c0_12] : memref<3x9x8x1xf32, #tpu.memory_space<vmem>>, vector<1x1x8x1xf32>
    %9 = vector.shape_cast %8 : vector<1x1x8x1xf32> to vector<8x1xf32>
    %10 = vector.broadcast %9 : vector<8x1xf32> to vector<8x6xf32>
    %11 = arith.mulf %7, %10 : vector<8x6xf32>
    %c2 = arith.constant 2 : index
    %c0_13 = arith.constant 0 : index
    %c0_14 = arith.constant 0 : index
    %c0_15 = arith.constant 0 : index
    %12 = vector.load %arg4[%c2, %c0_13, %c0_14, %c0_15] : memref<3x9x8x1xf32, #tpu.memory_space<vmem>>, vector<1x1x8x1xf32>
    %13 = vector.shape_cast %12 : vector<1x1x8x1xf32> to vector<8x1xf32>
    %14 = vector.broadcast %13 : vector<8x1xf32> to vector<8x6xf32>
    %15 = arith.mulf %7, %14 : vector<8x6xf32>
    %c0_16 = arith.constant 0 : index
    %c0_17 = arith.constant 0 : index
    %c1_18 = arith.constant 1 : index
    %16 = vector.load %arg1[%c0_16, %c0_17, %c1_18] : memref<1x8x38xf32, #tpu.memory_space<vmem>>, vector<1x8x24xf32>
    %17 = vector.shape_cast %16 : vector<1x8x24xf32> to vector<8x24xf32>
    %c0_19 = arith.constant 0 : index
    %c1_20 = arith.constant 1 : index
    %c0_21 = arith.constant 0 : index
    %c0_22 = arith.constant 0 : index
    %18 = vector.load %arg4[%c0_19, %c1_20, %c0_21, %c0_22] : memref<3x9x8x1xf32, #tpu.memory_space<vmem>>, vector<1x1x8x1xf32>
    %19 = vector.shape_cast %18 : vector<1x1x8x1xf32> to vector<8x1xf32>
    %20 = vector.broadcast %19 : vector<8x1xf32> to vector<8x24xf32>
    %21 = arith.mulf %17, %20 : vector<8x24xf32>
    %22 = arith.addf %5, %21 : vector<8x24xf32>
    %c0_23 = arith.constant 0 : index
    %c1_24 = arith.constant 1 : index
    %c0_25 = arith.constant 0 : index
    %c0_26 = arith.constant 0 : index
    %23 = vector.load %arg2[%c0_23, %c1_24, %c0_25, %c0_26] : memref<1x4x8x11xf32, #tpu.memory_space<vmem>>, vector<1x1x8x6xf32>
    %24 = vector.shape_cast %23 : vector<1x1x8x6xf32> to vector<8x6xf32>
    %c1_27 = arith.constant 1 : index
    %c1_28 = arith.constant 1 : index
    %c0_29 = arith.constant 0 : index
    %c0_30 = arith.constant 0 : index
    %25 = vector.load %arg4[%c1_27, %c1_28, %c0_29, %c0_30] : memref<3x9x8x1xf32, #tpu.memory_space<vmem>>, vector<1x1x8x1xf32>
    %26 = vector.shape_cast %25 : vector<1x1x8x1xf32> to vector<8x1xf32>
    %27 = vector.broadcast %26 : vector<8x1xf32> to vector<8x6xf32>
    %28 = arith.mulf %24, %27 : vector<8x6xf32>
    %29 = arith.addf %11, %28 : vector<8x6xf32>
    %c2_31 = arith.constant 2 : index
    %c1_32 = arith.constant 1 : index
    %c0_33 = arith.constant 0 : index
    %c0_34 = arith.constant 0 : index
    %30 = vector.load %arg4[%c2_31, %c1_32, %c0_33, %c0_34] : memref<3x9x8x1xf32, #tpu.memory_space<vmem>>, vector<1x1x8x1xf32>
    %31 = vector.shape_cast %30 : vector<1x1x8x1xf32> to vector<8x1xf32>
    %32 = vector.broadcast %31 : vector<8x1xf32> to vector<8x6xf32>
    %33 = arith.mulf %24, %32 : vector<8x6xf32>
    %34 = arith.addf %15, %33 : vector<8x6xf32>
    %c0_35 = arith.constant 0 : index
    %c0_36 = arith.constant 0 : index
    %c2_37 = arith.constant 2 : index
    %35 = vector.load %arg1[%c0_35, %c0_36, %c2_37] : memref<1x8x38xf32, #tpu.memory_space<vmem>>, vector<1x8x24xf32>
    %36 = vector.shape_cast %35 : vector<1x8x24xf32> to vector<8x24xf32>
    %c0_38 = arith.constant 0 : index
    %c2_39 = arith.constant 2 : index
    %c0_40 = arith.constant 0 : index
    %c0_41 = arith.constant 0 : index
    %37 = vector.load %arg4[%c0_38, %c2_39, %c0_40, %c0_41] : memref<3x9x8x1xf32, #tpu.memory_space<vmem>>, vector<1x1x8x1xf32>
    %38 = vector.shape_cast %37 : vector<1x1x8x1xf32> to vector<8x1xf32>
    %39 = vector.broadcast %38 : vector<8x1xf32> to vector<8x24xf32>
    %40 = arith.mulf %36, %39 : vector<8x24xf32>
    %41 = arith.addf %22, %40 : vector<8x24xf32>
    %c0_42 = arith.constant 0 : index
    %c0_43 = arith.constant 0 : index
    %c0_44 = arith.constant 0 : index
    %c1_45 = arith.constant 1 : index
    %42 = vector.load %arg2[%c0_42, %c0_43, %c0_44, %c1_45] : memref<1x4x8x11xf32, #tpu.memory_space<vmem>>, vector<1x1x8x6xf32>
    %43 = vector.shape_cast %42 : vector<1x1x8x6xf32> to vector<8x6xf32>
    %c1_46 = arith.constant 1 : index
    %c2_47 = arith.constant 2 : index
    %c0_48 = arith.constant 0 : index
    %c0_49 = arith.constant 0 : index
    %44 = vector.load %arg4[%c1_46, %c2_47, %c0_48, %c0_49] : memref<3x9x8x1xf32, #tpu.memory_space<vmem>>, vector<1x1x8x1xf32>
    %45 = vector.shape_cast %44 : vector<1x1x8x1xf32> to vector<8x1xf32>
    %46 = vector.broadcast %45 : vector<8x1xf32> to vector<8x6xf32>
    %47 = arith.mulf %43, %46 : vector<8x6xf32>
    %48 = arith.addf %29, %47 : vector<8x6xf32>
    %c2_50 = arith.constant 2 : index
    %c2_51 = arith.constant 2 : index
    %c0_52 = arith.constant 0 : index
    %c0_53 = arith.constant 0 : index
    %49 = vector.load %arg4[%c2_50, %c2_51, %c0_52, %c0_53] : memref<3x9x8x1xf32, #tpu.memory_space<vmem>>, vector<1x1x8x1xf32>
    %50 = vector.shape_cast %49 : vector<1x1x8x1xf32> to vector<8x1xf32>
    %51 = vector.broadcast %50 : vector<8x1xf32> to vector<8x6xf32>
    %52 = arith.mulf %43, %51 : vector<8x6xf32>
    %53 = arith.addf %34, %52 : vector<8x6xf32>
    %c0_54 = arith.constant 0 : index
    %c0_55 = arith.constant 0 : index
    %c6 = arith.constant 6 : index
    %54 = vector.load %arg1[%c0_54, %c0_55, %c6] : memref<1x8x38xf32, #tpu.memory_space<vmem>>, vector<1x8x24xf32>
    %55 = vector.shape_cast %54 : vector<1x8x24xf32> to vector<8x24xf32>
    %c0_56 = arith.constant 0 : index
    %c3 = arith.constant 3 : index
    %c0_57 = arith.constant 0 : index
    %c0_58 = arith.constant 0 : index
    %56 = vector.load %arg4[%c0_56, %c3, %c0_57, %c0_58] : memref<3x9x8x1xf32, #tpu.memory_space<vmem>>, vector<1x1x8x1xf32>
    %57 = vector.shape_cast %56 : vector<1x1x8x1xf32> to vector<8x1xf32>
    %58 = vector.broadcast %57 : vector<8x1xf32> to vector<8x24xf32>
    %59 = arith.mulf %55, %58 : vector<8x24xf32>
    %60 = arith.addf %41, %59 : vector<8x24xf32>
    %c0_59 = arith.constant 0 : index
    %c2_60 = arith.constant 2 : index
    %c0_61 = arith.constant 0 : index
    %c0_62 = arith.constant 0 : index
    %61 = vector.load %arg2[%c0_59, %c2_60, %c0_61, %c0_62] : memref<1x4x8x11xf32, #tpu.memory_space<vmem>>, vector<1x1x8x6xf32>
    %62 = vector.shape_cast %61 : vector<1x1x8x6xf32> to vector<8x6xf32>
    %c1_63 = arith.constant 1 : index
    %c3_64 = arith.constant 3 : index
    %c0_65 = arith.constant 0 : index
    %c0_66 = arith.constant 0 : index
    %63 = vector.load %arg4[%c1_63, %c3_64, %c0_65, %c0_66] : memref<3x9x8x1xf32, #tpu.memory_space<vmem>>, vector<1x1x8x1xf32>
    %64 = vector.shape_cast %63 : vector<1x1x8x1xf32> to vector<8x1xf32>
    %65 = vector.broadcast %64 : vector<8x1xf32> to vector<8x6xf32>
    %66 = arith.mulf %62, %65 : vector<8x6xf32>
    %67 = arith.addf %48, %66 : vector<8x6xf32>
    %c2_67 = arith.constant 2 : index
    %c3_68 = arith.constant 3 : index
    %c0_69 = arith.constant 0 : index
    %c0_70 = arith.constant 0 : index
    %68 = vector.load %arg4[%c2_67, %c3_68, %c0_69, %c0_70] : memref<3x9x8x1xf32, #tpu.memory_space<vmem>>, vector<1x1x8x1xf32>
    %69 = vector.shape_cast %68 : vector<1x1x8x1xf32> to vector<8x1xf32>
    %70 = vector.broadcast %69 : vector<8x1xf32> to vector<8x6xf32>
    %71 = arith.mulf %62, %70 : vector<8x6xf32>
    %72 = arith.addf %53, %71 : vector<8x6xf32>
    %c0_71 = arith.constant 0 : index
    %c0_72 = arith.constant 0 : index
    %c7 = arith.constant 7 : index
    %73 = vector.load %arg1[%c0_71, %c0_72, %c7] : memref<1x8x38xf32, #tpu.memory_space<vmem>>, vector<1x8x24xf32>
    %74 = vector.shape_cast %73 : vector<1x8x24xf32> to vector<8x24xf32>
    %c0_73 = arith.constant 0 : index
    %c4 = arith.constant 4 : index
    %c0_74 = arith.constant 0 : index
    %c0_75 = arith.constant 0 : index
    %75 = vector.load %arg4[%c0_73, %c4, %c0_74, %c0_75] : memref<3x9x8x1xf32, #tpu.memory_space<vmem>>, vector<1x1x8x1xf32>
    %76 = vector.shape_cast %75 : vector<1x1x8x1xf32> to vector<8x1xf32>
    %77 = vector.broadcast %76 : vector<8x1xf32> to vector<8x24xf32>
    %78 = arith.mulf %74, %77 : vector<8x24xf32>
    %79 = arith.addf %60, %78 : vector<8x24xf32>
    %c0_76 = arith.constant 0 : index
    %c3_77 = arith.constant 3 : index
    %c0_78 = arith.constant 0 : index
    %c0_79 = arith.constant 0 : index
    %80 = vector.load %arg2[%c0_76, %c3_77, %c0_78, %c0_79] : memref<1x4x8x11xf32, #tpu.memory_space<vmem>>, vector<1x1x8x6xf32>
    %81 = vector.shape_cast %80 : vector<1x1x8x6xf32> to vector<8x6xf32>
    %c1_80 = arith.constant 1 : index
    %c4_81 = arith.constant 4 : index
    %c0_82 = arith.constant 0 : index
    %c0_83 = arith.constant 0 : index
    %82 = vector.load %arg4[%c1_80, %c4_81, %c0_82, %c0_83] : memref<3x9x8x1xf32, #tpu.memory_space<vmem>>, vector<1x1x8x1xf32>
    %83 = vector.shape_cast %82 : vector<1x1x8x1xf32> to vector<8x1xf32>
    %84 = vector.broadcast %83 : vector<8x1xf32> to vector<8x6xf32>
    %85 = arith.mulf %81, %84 : vector<8x6xf32>
    %86 = arith.addf %67, %85 : vector<8x6xf32>
    %c2_84 = arith.constant 2 : index
    %c4_85 = arith.constant 4 : index
    %c0_86 = arith.constant 0 : index
    %c0_87 = arith.constant 0 : index
    %87 = vector.load %arg4[%c2_84, %c4_85, %c0_86, %c0_87] : memref<3x9x8x1xf32, #tpu.memory_space<vmem>>, vector<1x1x8x1xf32>
    %88 = vector.shape_cast %87 : vector<1x1x8x1xf32> to vector<8x1xf32>
    %89 = vector.broadcast %88 : vector<8x1xf32> to vector<8x6xf32>
    %90 = arith.mulf %81, %89 : vector<8x6xf32>
    %91 = arith.addf %72, %90 : vector<8x6xf32>
    %c0_88 = arith.constant 0 : index
    %c0_89 = arith.constant 0 : index
    %c8 = arith.constant 8 : index
    %92 = vector.load %arg1[%c0_88, %c0_89, %c8] : memref<1x8x38xf32, #tpu.memory_space<vmem>>, vector<1x8x24xf32>
    %93 = vector.shape_cast %92 : vector<1x8x24xf32> to vector<8x24xf32>
    %c0_90 = arith.constant 0 : index
    %c5 = arith.constant 5 : index
    %c0_91 = arith.constant 0 : index
    %c0_92 = arith.constant 0 : index
    %94 = vector.load %arg4[%c0_90, %c5, %c0_91, %c0_92] : memref<3x9x8x1xf32, #tpu.memory_space<vmem>>, vector<1x1x8x1xf32>
    %95 = vector.shape_cast %94 : vector<1x1x8x1xf32> to vector<8x1xf32>
    %96 = vector.broadcast %95 : vector<8x1xf32> to vector<8x24xf32>
    %97 = arith.mulf %93, %96 : vector<8x24xf32>
    %98 = arith.addf %79, %97 : vector<8x24xf32>
    %c0_93 = arith.constant 0 : index
    %c2_94 = arith.constant 2 : index
    %c0_95 = arith.constant 0 : index
    %c1_96 = arith.constant 1 : index
    %99 = vector.load %arg2[%c0_93, %c2_94, %c0_95, %c1_96] : memref<1x4x8x11xf32, #tpu.memory_space<vmem>>, vector<1x1x8x6xf32>
    %100 = vector.shape_cast %99 : vector<1x1x8x6xf32> to vector<8x6xf32>
    %c1_97 = arith.constant 1 : index
    %c5_98 = arith.constant 5 : index
    %c0_99 = arith.constant 0 : index
    %c0_100 = arith.constant 0 : index
    %101 = vector.load %arg4[%c1_97, %c5_98, %c0_99, %c0_100] : memref<3x9x8x1xf32, #tpu.memory_space<vmem>>, vector<1x1x8x1xf32>
    %102 = vector.shape_cast %101 : vector<1x1x8x1xf32> to vector<8x1xf32>
    %103 = vector.broadcast %102 : vector<8x1xf32> to vector<8x6xf32>
    %104 = arith.mulf %100, %103 : vector<8x6xf32>
    %105 = arith.addf %86, %104 : vector<8x6xf32>
    %c2_101 = arith.constant 2 : index
    %c5_102 = arith.constant 5 : index
    %c0_103 = arith.constant 0 : index
    %c0_104 = arith.constant 0 : index
    %106 = vector.load %arg4[%c2_101, %c5_102, %c0_103, %c0_104] : memref<3x9x8x1xf32, #tpu.memory_space<vmem>>, vector<1x1x8x1xf32>
    %107 = vector.shape_cast %106 : vector<1x1x8x1xf32> to vector<8x1xf32>
    %108 = vector.broadcast %107 : vector<8x1xf32> to vector<8x6xf32>
    %109 = arith.mulf %100, %108 : vector<8x6xf32>
    %110 = arith.addf %91, %109 : vector<8x6xf32>
    %c0_105 = arith.constant 0 : index
    %c0_106 = arith.constant 0 : index
    %c12 = arith.constant 12 : index
    %111 = vector.load %arg1[%c0_105, %c0_106, %c12] : memref<1x8x38xf32, #tpu.memory_space<vmem>>, vector<1x8x24xf32>
    %112 = vector.shape_cast %111 : vector<1x8x24xf32> to vector<8x24xf32>
    %c0_107 = arith.constant 0 : index
    %c6_108 = arith.constant 6 : index
    %c0_109 = arith.constant 0 : index
    %c0_110 = arith.constant 0 : index
    %113 = vector.load %arg4[%c0_107, %c6_108, %c0_109, %c0_110] : memref<3x9x8x1xf32, #tpu.memory_space<vmem>>, vector<1x1x8x1xf32>
    %114 = vector.shape_cast %113 : vector<1x1x8x1xf32> to vector<8x1xf32>
    %115 = vector.broadcast %114 : vector<8x1xf32> to vector<8x24xf32>
    %116 = arith.mulf %112, %115 : vector<8x24xf32>
    %117 = arith.addf %98, %116 : vector<8x24xf32>
    %c0_111 = arith.constant 0 : index
    %c0_112 = arith.constant 0 : index
    %c0_113 = arith.constant 0 : index
    %c3_114 = arith.constant 3 : index
    %118 = vector.load %arg2[%c0_111, %c0_112, %c0_113, %c3_114] : memref<1x4x8x11xf32, #tpu.memory_space<vmem>>, vector<1x1x8x6xf32>
    %119 = vector.shape_cast %118 : vector<1x1x8x6xf32> to vector<8x6xf32>
    %c1_115 = arith.constant 1 : index
    %c6_116 = arith.constant 6 : index
    %c0_117 = arith.constant 0 : index
    %c0_118 = arith.constant 0 : index
    %120 = vector.load %arg4[%c1_115, %c6_116, %c0_117, %c0_118] : memref<3x9x8x1xf32, #tpu.memory_space<vmem>>, vector<1x1x8x1xf32>
    %121 = vector.shape_cast %120 : vector<1x1x8x1xf32> to vector<8x1xf32>
    %122 = vector.broadcast %121 : vector<8x1xf32> to vector<8x6xf32>
    %123 = arith.mulf %119, %122 : vector<8x6xf32>
    %124 = arith.addf %105, %123 : vector<8x6xf32>
    %c2_119 = arith.constant 2 : index
    %c6_120 = arith.constant 6 : index
    %c0_121 = arith.constant 0 : index
    %c0_122 = arith.constant 0 : index
    %125 = vector.load %arg4[%c2_119, %c6_120, %c0_121, %c0_122] : memref<3x9x8x1xf32, #tpu.memory_space<vmem>>, vector<1x1x8x1xf32>
    %126 = vector.shape_cast %125 : vector<1x1x8x1xf32> to vector<8x1xf32>
    %127 = vector.broadcast %126 : vector<8x1xf32> to vector<8x6xf32>
    %128 = arith.mulf %119, %127 : vector<8x6xf32>
    %129 = arith.addf %110, %128 : vector<8x6xf32>
    %c0_123 = arith.constant 0 : index
    %c0_124 = arith.constant 0 : index
    %c13 = arith.constant 13 : index
    %130 = vector.load %arg1[%c0_123, %c0_124, %c13] : memref<1x8x38xf32, #tpu.memory_space<vmem>>, vector<1x8x24xf32>
    %131 = vector.shape_cast %130 : vector<1x8x24xf32> to vector<8x24xf32>
    %c0_125 = arith.constant 0 : index
    %c7_126 = arith.constant 7 : index
    %c0_127 = arith.constant 0 : index
    %c0_128 = arith.constant 0 : index
    %132 = vector.load %arg4[%c0_125, %c7_126, %c0_127, %c0_128] : memref<3x9x8x1xf32, #tpu.memory_space<vmem>>, vector<1x1x8x1xf32>
    %133 = vector.shape_cast %132 : vector<1x1x8x1xf32> to vector<8x1xf32>
    %134 = vector.broadcast %133 : vector<8x1xf32> to vector<8x24xf32>
    %135 = arith.mulf %131, %134 : vector<8x24xf32>
    %136 = arith.addf %117, %135 : vector<8x24xf32>
    %c0_129 = arith.constant 0 : index
    %c1_130 = arith.constant 1 : index
    %c0_131 = arith.constant 0 : index
    %c3_132 = arith.constant 3 : index
    %137 = vector.load %arg2[%c0_129, %c1_130, %c0_131, %c3_132] : memref<1x4x8x11xf32, #tpu.memory_space<vmem>>, vector<1x1x8x6xf32>
    %138 = vector.shape_cast %137 : vector<1x1x8x6xf32> to vector<8x6xf32>
    %c1_133 = arith.constant 1 : index
    %c7_134 = arith.constant 7 : index
    %c0_135 = arith.constant 0 : index
    %c0_136 = arith.constant 0 : index
    %139 = vector.load %arg4[%c1_133, %c7_134, %c0_135, %c0_136] : memref<3x9x8x1xf32, #tpu.memory_space<vmem>>, vector<1x1x8x1xf32>
    %140 = vector.shape_cast %139 : vector<1x1x8x1xf32> to vector<8x1xf32>
    %141 = vector.broadcast %140 : vector<8x1xf32> to vector<8x6xf32>
    %142 = arith.mulf %138, %141 : vector<8x6xf32>
    %143 = arith.addf %124, %142 : vector<8x6xf32>
    %c2_137 = arith.constant 2 : index
    %c7_138 = arith.constant 7 : index
    %c0_139 = arith.constant 0 : index
    %c0_140 = arith.constant 0 : index
    %144 = vector.load %arg4[%c2_137, %c7_138, %c0_139, %c0_140] : memref<3x9x8x1xf32, #tpu.memory_space<vmem>>, vector<1x1x8x1xf32>
    %145 = vector.shape_cast %144 : vector<1x1x8x1xf32> to vector<8x1xf32>
    %146 = vector.broadcast %145 : vector<8x1xf32> to vector<8x6xf32>
    %147 = arith.mulf %138, %146 : vector<8x6xf32>
    %148 = arith.addf %129, %147 : vector<8x6xf32>
    %c0_141 = arith.constant 0 : index
    %c0_142 = arith.constant 0 : index
    %c14 = arith.constant 14 : index
    %149 = vector.load %arg1[%c0_141, %c0_142, %c14] : memref<1x8x38xf32, #tpu.memory_space<vmem>>, vector<1x8x24xf32>
    %150 = vector.shape_cast %149 : vector<1x8x24xf32> to vector<8x24xf32>
    %c0_143 = arith.constant 0 : index
    %c8_144 = arith.constant 8 : index
    %c0_145 = arith.constant 0 : index
    %c0_146 = arith.constant 0 : index
    %151 = vector.load %arg4[%c0_143, %c8_144, %c0_145, %c0_146] : memref<3x9x8x1xf32, #tpu.memory_space<vmem>>, vector<1x1x8x1xf32>
    %152 = vector.shape_cast %151 : vector<1x1x8x1xf32> to vector<8x1xf32>
    %153 = vector.broadcast %152 : vector<8x1xf32> to vector<8x24xf32>
    %154 = arith.mulf %150, %153 : vector<8x24xf32>
    %155 = arith.addf %136, %154 : vector<8x24xf32>
    %c0_147 = arith.constant 0 : index
    %c0_148 = arith.constant 0 : index
    %c0_149 = arith.constant 0 : index
    %c4_150 = arith.constant 4 : index
    %156 = vector.load %arg2[%c0_147, %c0_148, %c0_149, %c4_150] : memref<1x4x8x11xf32, #tpu.memory_space<vmem>>, vector<1x1x8x6xf32>
    %157 = vector.shape_cast %156 : vector<1x1x8x6xf32> to vector<8x6xf32>
    %c1_151 = arith.constant 1 : index
    %c8_152 = arith.constant 8 : index
    %c0_153 = arith.constant 0 : index
    %c0_154 = arith.constant 0 : index
    %158 = vector.load %arg4[%c1_151, %c8_152, %c0_153, %c0_154] : memref<3x9x8x1xf32, #tpu.memory_space<vmem>>, vector<1x1x8x1xf32>
    %159 = vector.shape_cast %158 : vector<1x1x8x1xf32> to vector<8x1xf32>
    %160 = vector.broadcast %159 : vector<8x1xf32> to vector<8x6xf32>
    %161 = arith.mulf %157, %160 : vector<8x6xf32>
    %162 = arith.addf %143, %161 : vector<8x6xf32>
    %c2_155 = arith.constant 2 : index
    %c8_156 = arith.constant 8 : index
    %c0_157 = arith.constant 0 : index
    %c0_158 = arith.constant 0 : index
    %163 = vector.load %arg4[%c2_155, %c8_156, %c0_157, %c0_158] : memref<3x9x8x1xf32, #tpu.memory_space<vmem>>, vector<1x1x8x1xf32>
    %164 = vector.shape_cast %163 : vector<1x1x8x1xf32> to vector<8x1xf32>
    %165 = vector.broadcast %164 : vector<8x1xf32> to vector<8x6xf32>
    %166 = arith.mulf %157, %165 : vector<8x6xf32>
    %167 = arith.addf %148, %166 : vector<8x6xf32>
    %c0_159 = arith.constant 0 : index
    %c0_160 = arith.constant 0 : index
    %c0_161 = arith.constant 0 : index
    %168 = vector.load %arg5[%c0_159, %c0_160, %c0_161] : memref<3x8x8xf32, #tpu.memory_space<vmem>>, vector<1x8x8xf32>
    %169 = vector.shape_cast %168 : vector<1x8x8xf32> to vector<8x8xf32>
    %cst = arith.constant dense<0.000000e+00> : vector<8x24xf32>
    %170 = tpu.matmul %169, %155, %cst {dimension_numbers = #tpu.dot_dimension_numbers<[1], [0], [0], [1], [0, 0, 1, 1], [], []>} : vector<8x8xf32>, vector<8x24xf32>, vector<8x24xf32> -> vector<8x24xf32>
    %c0_162 = arith.constant 0 : index
    %c0_163 = arith.constant 0 : index
    %c0_164 = arith.constant 0 : index
    %171 = vector.load %arg6[%c0_162, %c0_163, %c0_164] : memref<3x8x1xf32, #tpu.memory_space<vmem>>, vector<1x8x1xf32>
    %172 = vector.shape_cast %171 : vector<1x8x1xf32> to vector<8x1xf32>
    %173 = vector.broadcast %172 : vector<8x1xf32> to vector<8x24xf32>
    %174 = arith.addf %170, %173 : vector<8x24xf32>
    %cst_165 = arith.constant 5.000000e-01 : f32
    %175 = vector.broadcast %cst_165 : f32 to vector<8x24xf32>
    %176 = arith.mulf %175, %174 : vector<8x24xf32>
    %cst_166 = arith.constant 0.707106769 : f32
    %177 = vector.broadcast %cst_166 : f32 to vector<8x24xf32>
    %178 = arith.mulf %174, %177 : vector<8x24xf32>
    %179 = math.absf %178 : vector<8x24xf32>
    %cst_167 = arith.constant 0.327591091 : f32
    %180 = vector.broadcast %cst_167 : f32 to vector<8x24xf32>
    %181 = arith.mulf %180, %179 : vector<8x24xf32>
    %cst_168 = arith.constant 1.000000e+00 : f32
    %182 = vector.broadcast %cst_168 : f32 to vector<8x24xf32>
    %183 = arith.addf %182, %181 : vector<8x24xf32>
    %184 = tpu.reciprocal %183 {approx = true} : vector<8x24xf32> -> vector<8x24xf32>
    %185 = arith.mulf %183, %184 : vector<8x24xf32>
    %cst_169 = arith.constant 2.000000e+00 : f32
    %186 = vector.broadcast %cst_169 : f32 to vector<8x24xf32>
    %187 = arith.subf %186, %185 : vector<8x24xf32>
    %188 = arith.mulf %184, %187 : vector<8x24xf32>
    %cst_170 = arith.constant 1.06140542 : f32
    %189 = vector.broadcast %cst_170 : f32 to vector<8x24xf32>
    %190 = arith.mulf %189, %188 : vector<8x24xf32>
    %cst_171 = arith.constant -1.45315206 : f32
    %191 = vector.broadcast %cst_171 : f32 to vector<8x24xf32>
    %192 = arith.addf %190, %191 : vector<8x24xf32>
    %193 = arith.mulf %192, %188 : vector<8x24xf32>
    %cst_172 = arith.constant 1.42141378 : f32
    %194 = vector.broadcast %cst_172 : f32 to vector<8x24xf32>
    %195 = arith.addf %193, %194 : vector<8x24xf32>
    %196 = arith.mulf %195, %188 : vector<8x24xf32>
    %cst_173 = arith.constant -0.284496725 : f32
    %197 = vector.broadcast %cst_173 : f32 to vector<8x24xf32>
    %198 = arith.addf %196, %197 : vector<8x24xf32>
    %199 = arith.mulf %198, %188 : vector<8x24xf32>
    %cst_174 = arith.constant 0.254829586 : f32
    %200 = vector.broadcast %cst_174 : f32 to vector<8x24xf32>
    %201 = arith.addf %199, %200 : vector<8x24xf32>
    %202 = arith.mulf %201, %188 : vector<8x24xf32>
    %cst_175 = arith.constant 0.000000e+00 : f32
    %203 = vector.broadcast %cst_175 : f32 to vector<8x24xf32>
    %204 = arith.subf %203, %179 : vector<8x24xf32>
    %205 = arith.mulf %204, %179 : vector<8x24xf32>
    %206 = math.exp %205 : vector<8x24xf32>
    %207 = arith.mulf %202, %206 : vector<8x24xf32>
    %cst_176 = arith.constant 1.000000e+00 : f32
    %208 = vector.broadcast %cst_176 : f32 to vector<8x24xf32>
    %209 = arith.subf %208, %207 : vector<8x24xf32>
    %cst_177 = arith.constant 0.000000e+00 : f32
    %210 = vector.broadcast %cst_177 : f32 to vector<8x24xf32>
    %211 = arith.cmpf oge, %178, %210 : vector<8x24xf32>
    %cst_178 = arith.constant 0.000000e+00 : f32
    %212 = vector.broadcast %cst_178 : f32 to vector<8x24xf32>
    %213 = arith.subf %212, %209 : vector<8x24xf32>
    %214 = arith.select %211, %209, %213 : vector<8x24xi1>, vector<8x24xf32>
    %cst_179 = arith.constant 1.000000e+00 : f32
    %215 = vector.broadcast %cst_179 : f32 to vector<8x24xf32>
    %216 = arith.addf %215, %214 : vector<8x24xf32>
    %217 = arith.mulf %176, %216 : vector<8x24xf32>
    %c1_180 = arith.constant 1 : index
    %c0_181 = arith.constant 0 : index
    %c0_182 = arith.constant 0 : index
    %218 = vector.load %arg5[%c1_180, %c0_181, %c0_182] : memref<3x8x8xf32, #tpu.memory_space<vmem>>, vector<1x8x8xf32>
    %219 = vector.shape_cast %218 : vector<1x8x8xf32> to vector<8x8xf32>
    %cst_183 = arith.constant dense<0.000000e+00> : vector<8x6xf32>
    %220 = tpu.matmul %219, %162, %cst_183 {dimension_numbers = #tpu.dot_dimension_numbers<[1], [0], [0], [1], [0, 0, 1, 1], [], []>} : vector<8x8xf32>, vector<8x6xf32>, vector<8x6xf32> -> vector<8x6xf32>
    %c1_184 = arith.constant 1 : index
    %c0_185 = arith.constant 0 : index
    %c0_186 = arith.constant 0 : index
    %221 = vector.load %arg6[%c1_184, %c0_185, %c0_186] : memref<3x8x1xf32, #tpu.memory_space<vmem>>, vector<1x8x1xf32>
    %222 = vector.shape_cast %221 : vector<1x8x1xf32> to vector<8x1xf32>
    %223 = vector.broadcast %222 : vector<8x1xf32> to vector<8x6xf32>
    %224 = arith.addf %220, %223 : vector<8x6xf32>
    %cst_187 = arith.constant 5.000000e-01 : f32
    %225 = vector.broadcast %cst_187 : f32 to vector<8x6xf32>
    %226 = arith.mulf %225, %224 : vector<8x6xf32>
    %cst_188 = arith.constant 0.707106769 : f32
    %227 = vector.broadcast %cst_188 : f32 to vector<8x6xf32>
    %228 = arith.mulf %224, %227 : vector<8x6xf32>
    %229 = math.absf %228 : vector<8x6xf32>
    %cst_189 = arith.constant 0.327591091 : f32
    %230 = vector.broadcast %cst_189 : f32 to vector<8x6xf32>
    %231 = arith.mulf %230, %229 : vector<8x6xf32>
    %cst_190 = arith.constant 1.000000e+00 : f32
    %232 = vector.broadcast %cst_190 : f32 to vector<8x6xf32>
    %233 = arith.addf %232, %231 : vector<8x6xf32>
    %234 = tpu.reciprocal %233 {approx = true} : vector<8x6xf32> -> vector<8x6xf32>
    %235 = arith.mulf %233, %234 : vector<8x6xf32>
    %cst_191 = arith.constant 2.000000e+00 : f32
    %236 = vector.broadcast %cst_191 : f32 to vector<8x6xf32>
    %237 = arith.subf %236, %235 : vector<8x6xf32>
    %238 = arith.mulf %234, %237 : vector<8x6xf32>
    %cst_192 = arith.constant 1.06140542 : f32
    %239 = vector.broadcast %cst_192 : f32 to vector<8x6xf32>
    %240 = arith.mulf %239, %238 : vector<8x6xf32>
    %cst_193 = arith.constant -1.45315206 : f32
    %241 = vector.broadcast %cst_193 : f32 to vector<8x6xf32>
    %242 = arith.addf %240, %241 : vector<8x6xf32>
    %243 = arith.mulf %242, %238 : vector<8x6xf32>
    %cst_194 = arith.constant 1.42141378 : f32
    %244 = vector.broadcast %cst_194 : f32 to vector<8x6xf32>
    %245 = arith.addf %243, %244 : vector<8x6xf32>
    %246 = arith.mulf %245, %238 : vector<8x6xf32>
    %cst_195 = arith.constant -0.284496725 : f32
    %247 = vector.broadcast %cst_195 : f32 to vector<8x6xf32>
    %248 = arith.addf %246, %247 : vector<8x6xf32>
    %249 = arith.mulf %248, %238 : vector<8x6xf32>
    %cst_196 = arith.constant 0.254829586 : f32
    %250 = vector.broadcast %cst_196 : f32 to vector<8x6xf32>
    %251 = arith.addf %249, %250 : vector<8x6xf32>
    %252 = arith.mulf %251, %238 : vector<8x6xf32>
    %cst_197 = arith.constant 0.000000e+00 : f32
    %253 = vector.broadcast %cst_197 : f32 to vector<8x6xf32>
    %254 = arith.subf %253, %229 : vector<8x6xf32>
    %255 = arith.mulf %254, %229 : vector<8x6xf32>
    %256 = math.exp %255 : vector<8x6xf32>
    %257 = arith.mulf %252, %256 : vector<8x6xf32>
    %cst_198 = arith.constant 1.000000e+00 : f32
    %258 = vector.broadcast %cst_198 : f32 to vector<8x6xf32>
    %259 = arith.subf %258, %257 : vector<8x6xf32>
    %cst_199 = arith.constant 0.000000e+00 : f32
    %260 = vector.broadcast %cst_199 : f32 to vector<8x6xf32>
    %261 = arith.cmpf oge, %228, %260 : vector<8x6xf32>
    %cst_200 = arith.constant 0.000000e+00 : f32
    %262 = vector.broadcast %cst_200 : f32 to vector<8x6xf32>
    %263 = arith.subf %262, %259 : vector<8x6xf32>
    %264 = arith.select %261, %259, %263 : vector<8x6xi1>, vector<8x6xf32>
    %cst_201 = arith.constant 1.000000e+00 : f32
    %265 = vector.broadcast %cst_201 : f32 to vector<8x6xf32>
    %266 = arith.addf %265, %264 : vector<8x6xf32>
    %267 = arith.mulf %226, %266 : vector<8x6xf32>
    %c2_202 = arith.constant 2 : index
    %c0_203 = arith.constant 0 : index
    %c0_204 = arith.constant 0 : index
    %268 = vector.load %arg5[%c2_202, %c0_203, %c0_204] : memref<3x8x8xf32, #tpu.memory_space<vmem>>, vector<1x8x8xf32>
    %269 = vector.shape_cast %268 : vector<1x8x8xf32> to vector<8x8xf32>
    %cst_205 = arith.constant dense<0.000000e+00> : vector<8x6xf32>
    %270 = tpu.matmul %269, %167, %cst_205 {dimension_numbers = #tpu.dot_dimension_numbers<[1], [0], [0], [1], [0, 0, 1, 1], [], []>} : vector<8x8xf32>, vector<8x6xf32>, vector<8x6xf32> -> vector<8x6xf32>
    %c2_206 = arith.constant 2 : index
    %c0_207 = arith.constant 0 : index
    %c0_208 = arith.constant 0 : index
    %271 = vector.load %arg6[%c2_206, %c0_207, %c0_208] : memref<3x8x1xf32, #tpu.memory_space<vmem>>, vector<1x8x1xf32>
    %272 = vector.shape_cast %271 : vector<1x8x1xf32> to vector<8x1xf32>
    %273 = vector.broadcast %272 : vector<8x1xf32> to vector<8x6xf32>
    %274 = arith.addf %270, %273 : vector<8x6xf32>
    %cst_209 = arith.constant 5.000000e-01 : f32
    %275 = vector.broadcast %cst_209 : f32 to vector<8x6xf32>
    %276 = arith.mulf %275, %274 : vector<8x6xf32>
    %cst_210 = arith.constant 0.707106769 : f32
    %277 = vector.broadcast %cst_210 : f32 to vector<8x6xf32>
    %278 = arith.mulf %274, %277 : vector<8x6xf32>
    %279 = math.absf %278 : vector<8x6xf32>
    %cst_211 = arith.constant 0.327591091 : f32
    %280 = vector.broadcast %cst_211 : f32 to vector<8x6xf32>
    %281 = arith.mulf %280, %279 : vector<8x6xf32>
    %cst_212 = arith.constant 1.000000e+00 : f32
    %282 = vector.broadcast %cst_212 : f32 to vector<8x6xf32>
    %283 = arith.addf %282, %281 : vector<8x6xf32>
    %284 = tpu.reciprocal %283 {approx = true} : vector<8x6xf32> -> vector<8x6xf32>
    %285 = arith.mulf %283, %284 : vector<8x6xf32>
    %cst_213 = arith.constant 2.000000e+00 : f32
    %286 = vector.broadcast %cst_213 : f32 to vector<8x6xf32>
    %287 = arith.subf %286, %285 : vector<8x6xf32>
    %288 = arith.mulf %284, %287 : vector<8x6xf32>
    %cst_214 = arith.constant 1.06140542 : f32
    %289 = vector.broadcast %cst_214 : f32 to vector<8x6xf32>
    %290 = arith.mulf %289, %288 : vector<8x6xf32>
    %cst_215 = arith.constant -1.45315206 : f32
    %291 = vector.broadcast %cst_215 : f32 to vector<8x6xf32>
    %292 = arith.addf %290, %291 : vector<8x6xf32>
    %293 = arith.mulf %292, %288 : vector<8x6xf32>
    %cst_216 = arith.constant 1.42141378 : f32
    %294 = vector.broadcast %cst_216 : f32 to vector<8x6xf32>
    %295 = arith.addf %293, %294 : vector<8x6xf32>
    %296 = arith.mulf %295, %288 : vector<8x6xf32>
    %cst_217 = arith.constant -0.284496725 : f32
    %297 = vector.broadcast %cst_217 : f32 to vector<8x6xf32>
    %298 = arith.addf %296, %297 : vector<8x6xf32>
    %299 = arith.mulf %298, %288 : vector<8x6xf32>
    %cst_218 = arith.constant 0.254829586 : f32
    %300 = vector.broadcast %cst_218 : f32 to vector<8x6xf32>
    %301 = arith.addf %299, %300 : vector<8x6xf32>
    %302 = arith.mulf %301, %288 : vector<8x6xf32>
    %cst_219 = arith.constant 0.000000e+00 : f32
    %303 = vector.broadcast %cst_219 : f32 to vector<8x6xf32>
    %304 = arith.subf %303, %279 : vector<8x6xf32>
    %305 = arith.mulf %304, %279 : vector<8x6xf32>
    %306 = math.exp %305 : vector<8x6xf32>
    %307 = arith.mulf %302, %306 : vector<8x6xf32>
    %cst_220 = arith.constant 1.000000e+00 : f32
    %308 = vector.broadcast %cst_220 : f32 to vector<8x6xf32>
    %309 = arith.subf %308, %307 : vector<8x6xf32>
    %cst_221 = arith.constant 0.000000e+00 : f32
    %310 = vector.broadcast %cst_221 : f32 to vector<8x6xf32>
    %311 = arith.cmpf oge, %278, %310 : vector<8x6xf32>
    %cst_222 = arith.constant 0.000000e+00 : f32
    %312 = vector.broadcast %cst_222 : f32 to vector<8x6xf32>
    %313 = arith.subf %312, %309 : vector<8x6xf32>
    %314 = arith.select %311, %309, %313 : vector<8x6xi1>, vector<8x6xf32>
    %cst_223 = arith.constant 1.000000e+00 : f32
    %315 = vector.broadcast %cst_223 : f32 to vector<8x6xf32>
    %316 = arith.addf %315, %314 : vector<8x6xf32>
    %317 = arith.mulf %276, %316 : vector<8x6xf32>
    %cst_224 = arith.constant dense<0xFF800000> : vector<24xf32>
    %318 = vector.multi_reduction <maximumf>, %217, %cst_224 [0] : vector<8x24xf32> to vector<24xf32>
    %319 = vector.shape_cast %318 : vector<24xf32> to vector<1x24xf32>
    %320 = vector.broadcast %319 : vector<1x24xf32> to vector<8x24xf32>
    %321 = arith.subf %217, %320 : vector<8x24xf32>
    %322 = math.exp %321 : vector<8x24xf32>
    %c0_225 = arith.constant 0 : index
    %c0_226 = arith.constant 0 : index
    %323 = vector.load %arg9[%c0_225, %c0_226] : memref<8x8xf32, #tpu.memory_space<vmem>>, vector<8x8xf32>
    %cst_227 = arith.constant dense<0.000000e+00> : vector<8x24xf32>
    %324 = tpu.matmul %323, %322, %cst_227 {dimension_numbers = #tpu.dot_dimension_numbers<[1], [0], [0], [1], [0, 0, 1, 1], [], []>} : vector<8x8xf32>, vector<8x24xf32>, vector<8x24xf32> -> vector<8x24xf32>
    %325 = tpu.reciprocal %324 {approx = true} : vector<8x24xf32> -> vector<8x24xf32>
    %326 = arith.mulf %324, %325 : vector<8x24xf32>
    %cst_228 = arith.constant 2.000000e+00 : f32
    %327 = vector.broadcast %cst_228 : f32 to vector<8x24xf32>
    %328 = arith.subf %327, %326 : vector<8x24xf32>
    %329 = arith.mulf %325, %328 : vector<8x24xf32>
    %330 = arith.mulf %322, %329 : vector<8x24xf32>
    %c0_229 = arith.constant 0 : index
    %c0_230 = arith.constant 0 : index
    %331 = vector.load %arg3[%c0_229, %c0_230] : memref<1x6xf32, #tpu.memory_space<vmem>>, vector<1x6xf32>
    %332 = vector.broadcast %331 : vector<1x6xf32> to vector<8x6xf32>
    %333 = arith.addf %267, %332 : vector<8x6xf32>
    %cst_231 = arith.constant dense<0xFF800000> : vector<8xf32>
    %334 = vector.multi_reduction <maximumf>, %333, %cst_231 [1] : vector<8x6xf32> to vector<8xf32>
    %335 = vector.shape_cast %334 : vector<8xf32> to vector<8x1xf32>
    %336 = vector.broadcast %335 : vector<8x1xf32> to vector<8x6xf32>
    %337 = arith.subf %333, %336 : vector<8x6xf32>
    %338 = math.exp %337 : vector<8x6xf32>
    %cst_232 = arith.constant dense<0.000000e+00> : vector<8xf32>
    %339 = vector.multi_reduction <add>, %338, %cst_232 [1] : vector<8x6xf32> to vector<8xf32>
    %340 = vector.shape_cast %339 : vector<8xf32> to vector<8x1xf32>
    %341 = tpu.reciprocal %340 {approx = true} : vector<8x1xf32> -> vector<8x1xf32>
    %342 = arith.mulf %340, %341 : vector<8x1xf32>
    %cst_233 = arith.constant 2.000000e+00 : f32
    %343 = vector.broadcast %cst_233 : f32 to vector<8x1xf32>
    %344 = arith.subf %343, %342 : vector<8x1xf32>
    %345 = arith.mulf %341, %344 : vector<8x1xf32>
    %346 = vector.broadcast %345 : vector<8x1xf32> to vector<8x6xf32>
    %347 = arith.mulf %338, %346 : vector<8x6xf32>
    %cst_234 = arith.constant dense<0.000000e+00> : vector<8x8xf32>
    %348 = tpu.matmul %317, %347, %cst_234 {dimension_numbers = #tpu.dot_dimension_numbers<[1], [1], [0], [0], [0, 0, 1, 0], [], []>} : vector<8x6xf32>, vector<8x6xf32>, vector<8x8xf32> -> vector<8x8xf32>
    %c0_235 = arith.constant 0 : index
    %c0_236 = arith.constant 0 : index
    %349 = vector.load %arg10[%c0_235, %c0_236] : memref<8x8xf32, #tpu.memory_space<vmem>>, vector<8x8xf32>
    %350 = arith.mulf %348, %349 : vector<8x8xf32>
    %cst_237 = arith.constant dense<0.000000e+00> : vector<8x24xf32>
    %351 = tpu.matmul %350, %330, %cst_237 {dimension_numbers = #tpu.dot_dimension_numbers<[1], [0], [0], [1], [0, 0, 1, 1], [], []>} : vector<8x8xf32>, vector<8x24xf32>, vector<8x24xf32> -> vector<8x24xf32>
    %c0_238 = arith.constant 0 : index
    %c0_239 = arith.constant 0 : index
    %352 = vector.load %arg7[%c0_238, %c0_239] : memref<8x1xf32, #tpu.memory_space<vmem>>, vector<8x1xf32>
    %353 = vector.broadcast %352 : vector<8x1xf32> to vector<8x24xf32>
    %354 = arith.mulf %74, %353 : vector<8x24xf32>
    %355 = arith.addf %351, %354 : vector<8x24xf32>
    %c0_240 = arith.constant 0 : index
    %c0_241 = arith.constant 0 : index
    %356 = vector.load %arg8[%c0_240, %c0_241] : memref<8x1xf32, #tpu.memory_space<vmem>>, vector<8x1xf32>
    %357 = vector.broadcast %356 : vector<8x1xf32> to vector<8x24xf32>
    %358 = arith.addf %355, %357 : vector<8x24xf32>
    %c0_242 = arith.constant 0 : index
    %c0_243 = arith.constant 0 : index
    %c0_244 = arith.constant 0 : index
    %359 = vector.load %arg11[%c0_242, %c0_243, %c0_244] : memref<1x8x24xf32, #tpu.memory_space<vmem>>, vector<1x8x24xf32>
    %360 = vector.shape_cast %359 : vector<1x8x24xf32> to vector<8x24xf32>
    %361 = vector.shape_cast %358 : vector<8x24xf32> to vector<1x8x24xf32>
    tpu.vector_store %arg11[%c0_242, %c0_243, %c0_244], %361 {strides = array<i32>} : memref<1x8x24xf32, #tpu.memory_space<vmem>>, vector<1x8x24xf32>,
    return
  }
  func.func @transform_0(%arg0: i32) -> (i32, i32, i32) {
    %c0_i32 = arith.constant 0 : i32
    %c0_i32_0 = arith.constant 0 : i32
    %c0_i32_1 = arith.constant 0 : i32
    return %arg0, %c0_i32, %c0_i32_0 : i32, i32, i32
  }
  func.func @transform_1(%arg0: i32) -> (i32, i32, i32, i32) {
    %c0_i32 = arith.constant 0 : i32
    %c0_i32_0 = arith.constant 0 : i32
    %c0_i32_1 = arith.constant 0 : i32
    %c0_i32_2 = arith.constant 0 : i32
    return %arg0, %c0_i32, %c0_i32_0, %c0_i32_1 : i32, i32, i32, i32
  }
  func.func @transform_2(%arg0: i32) -> (i32, i32) {
    %c0_i32 = arith.constant 0 : i32
    %c0_i32_0 = arith.constant 0 : i32
    %c0_i32_1 = arith.constant 0 : i32
    return %c0_i32, %c0_i32_0 : i32, i32
  }
  func.func @transform_3(%arg0: i32) -> (i32, i32, i32, i32) {
    %c0_i32 = arith.constant 0 : i32
    %c0_i32_0 = arith.constant 0 : i32
    %c0_i32_1 = arith.constant 0 : i32
    %c0_i32_2 = arith.constant 0 : i32
    %c0_i32_3 = arith.constant 0 : i32
    return %c0_i32, %c0_i32_0, %c0_i32_1, %c0_i32_2 : i32, i32, i32, i32
  }
  func.func @transform_4(%arg0: i32) -> (i32, i32, i32) {
    %c0_i32 = arith.constant 0 : i32
    %c0_i32_0 = arith.constant 0 : i32
    %c0_i32_1 = arith.constant 0 : i32
    %c0_i32_2 = arith.constant 0 : i32
    return %c0_i32, %c0_i32_0, %c0_i32_1 : i32, i32, i32
  }
  func.func @transform_5(%arg0: i32) -> (i32, i32, i32) {
    %c0_i32 = arith.constant 0 : i32
    %c0_i32_0 = arith.constant 0 : i32
    %c0_i32_1 = arith.constant 0 : i32
    %c0_i32_2 = arith.constant 0 : i32
    return %c0_i32, %c0_i32_0, %c0_i32_1 : i32, i32, i32
  }
  func.func @transform_6(%arg0: i32) -> (i32, i32) {
    %c0_i32 = arith.constant 0 : i32
    %c0_i32_0 = arith.constant 0 : i32
    %c0_i32_1 = arith.constant 0 : i32
    return %c0_i32, %c0_i32_0 : i32, i32
  }
  func.func @transform_7(%arg0: i32) -> (i32, i32) {
    %c0_i32 = arith.constant 0 : i32
    %c0_i32_0 = arith.constant 0 : i32
    %c0_i32_1 = arith.constant 0 : i32
    return %c0_i32, %c0_i32_0 : i32, i32
  }
  func.func @transform_8(%arg0: i32) -> (i32, i32) {
    %c0_i32 = arith.constant 0 : i32
    %c0_i32_0 = arith.constant 0 : i32
    %c0_i32_1 = arith.constant 0 : i32
    return %c0_i32, %c0_i32_0 : i32, i32
  }
  func.func @transform_9(%arg0: i32) -> (i32, i32) {
    %c0_i32 = arith.constant 0 : i32
    %c0_i32_0 = arith.constant 0 : i32
    %c0_i32_1 = arith.constant 0 : i32
    return %c0_i32, %c0_i32_0 : i32, i32
  }
  func.func @transform_10(%arg0: i32) -> (i32, i32, i32) {
    %c0_i32 = arith.constant 0 : i32
    %c0_i32_0 = arith.constant 0 : i32
    %c0_i32_1 = arith.constant 0 : i32
    return %arg0, %c0_i32, %c0_i32_0 : i32, i32, i32
  }
}

</mosaic_0001>

<llo_original>
// kernel: tpu_custom_call.1
$region0: #{tpu_custom_call.1}
  #allocation0 [shape = 'u32[]', space=smem, size = 0x4, offset = 0x4, fixed_abs, tag = 'smem constant byte address 0x4 - core index']
  #allocation1 [shape = 'u32[144,128]{1,0:T(1,128)}', space=vmem, size = 0x12000, scoped, tag = 'internal scratch']
  %s0 = inlined_call_operand.hbm [shape: f32[1,8,38], index: 0, kind: input, shape index: {}]
  %s1 = inlined_call_operand.hbm [shape: f32[1,4,8,11], index: 1, kind: input, shape index: {}]
  %s2 = inlined_call_operand.hbm [shape: f32[1,6], index: 2, kind: input, shape index: {}]
  %s3 = inlined_call_operand.hbm [shape: f32[3,9,8,1], index: 3, kind: input, shape index: {}]
  %s4 = inlined_call_operand.hbm [shape: f32[3,8,8], index: 4, kind: input, shape index: {}]
  %s5 = inlined_call_operand.hbm [shape: f32[3,8,1], index: 5, kind: input, shape index: {}]
  %s6 = inlined_call_operand.hbm [shape: f32[8,1], index: 6, kind: input, shape index: {}]
  %s7 = inlined_call_operand.hbm [shape: f32[8,1], index: 7, kind: input, shape index: {}]
  %s8 = inlined_call_operand.hbm [shape: f32[8,8], index: 8, kind: input, shape index: {}]
  %s9 = inlined_call_operand.hbm [shape: f32[8,8], index: 9, kind: input, shape index: {}]
  %s10 = inlined_call_operand.hbm [shape: f32[1,8,24], index: 10, kind: output, shape index: {}]
  %s11 = sld [smem:[#allocation0]]
  $region90: #{tpu_custom_call.1} parent=0
    _
  %s13 = ssub.s32 1, %s11
  %s14 = scalar_select 0, %s13, %s11
  $region1: #{tpu_custom_call.1} parent=0
    #allocation2 [shape = 'u8[4096]{0}', space=vmem, size = 0x1000, scoped, tag = 'input window, operand 0, single buffered']
    #allocation3 [shape = 's32[1]{0}', space=sflag, size = 0x4, scoped, tag = 'scoped memory for tpu_custom_call.1']
    #allocation4 [shape = 's32[1]{0}', space=sflag, size = 0x4, scoped, tag = 'scoped memory for tpu_custom_call.1']
    #allocation5 [shape = 'u8[16384]{0}', space=vmem, size = 0x4000, scoped, tag = 'input window, operand 1, single buffered']
    #allocation6 [shape = 's32[1]{0}', space=sflag, size = 0x4, scoped, tag = 'scoped memory for tpu_custom_call.1']
    #allocation7 [shape = 'u8[512]{0}', space=vmem, size = 0x400, scoped, tag = 'input window, operand 2, single buffered']
    #allocation8 [shape = 'u8[110592]{0}', space=vmem, size = 0x1b000, scoped, tag = 'input window, operand 3, single buffered']
    #allocation9 [shape = 's32[1]{0}', space=sflag, size = 0x4, scoped, tag = 'scoped memory for tpu_custom_call.1']
    #allocation10 [shape = 'u8[12288]{0}', space=vmem, size = 0x3000, scoped, tag = 'input window, operand 4, single buffered']
    #allocation11 [shape = 'u8[12288]{0}', space=vmem, size = 0x3000, scoped, tag = 'input window, operand 5, single buffered']
    #allocation12 [shape = 's32[1]{0}', space=sflag, size = 0x4, scoped, tag = 'scoped memory for tpu_custom_call.1']
    #allocation13 [shape = 'u8[4096]{0}', space=vmem, size = 0x1000, scoped, tag = 'input window, operand 6, single buffered']
    #allocation14 [shape = 'u8[4096]{0}', space=vmem, size = 0x1000, scoped, tag = 'input window, operand 7, single buffered']
    #allocation15 [shape = 's32[1]{0}', space=sflag, size = 0x4, scoped, tag = 'scoped memory for tpu_custom_call.1']
    #allocation16 [shape = 'u8[4096]{0}', space=vmem, size = 0x1000, scoped, tag = 'input window, operand 8, single buffered']
    #allocation17 [shape = 'u8[4096]{0}', space=vmem, size = 0x1000, scoped, tag = 'input window, operand 9, single buffered']
    #allocation18 [shape = 's32[1]{0}', space=sflag, size = 0x4, scoped, tag = 'scoped memory for tpu_custom_call.1']
    #allocation19 [shape = 'u8[4096]{0}', space=vmem, size = 0x1000, scoped, tag = 'output window, operand 0, single buffered']
    %15 = vsyncpa [#allocation3], 0
    %16 = vsyncpa [#allocation6], 0
    %17 = vsyncpa [#allocation9], 0
    %18 = vsyncpa [#allocation12], 0
    %19 = vsyncpa [#allocation15], 0
    %20 = vsyncpa [#allocation18], 0
    %21 = vsyncpa [#allocation4], 0
    // Predicated region
    $region2: #{tpu_custom_call.1} parent=1 // pred_check
      _
    $region3: #{tpu_custom_call.1} parent=1 // pred_check_branch
      %23 = sbr.rel (0) target = $region5
    $region4: #{tpu_custom_call.1} parent=1 // pred_region
      %s25 = ssub.s32 128, 128
      %26 = vsyncadd [#allocation3], %s25
      %s28 = sshll.u32 [#allocation2], 4
      %s29 = int_to_ptr.vmem [resolvable:$true] %s28
      %31 = dma.hbm_to_vmem [thread:$0]  %s0, 128, %s29, [#allocation3]
    $region5: #{tpu_custom_call.1} parent=1 // pred_fallthru
      _
    // Predicated region
    $region6: #{tpu_custom_call.1} parent=1 // pred_check
      _
    $region7: #{tpu_custom_call.1} parent=1 // pred_check_branch
      %33 = sbr.rel (0) target = $region9
    $region8: #{tpu_custom_call.1} parent=1 // pred_region
      %s35 = ssub.s32 512, 512
      %36 = vsyncadd [#allocation6], %s35
      %s37 = sshll.u32 [#allocation5], 4
      %s38 = int_to_ptr.vmem [resolvable:$true] %s37
      %43 = dma.hbm_to_vmem [thread:$0]  %s1, 512, %s38, [#allocation6], 128, 128, 8
    $region9: #{tpu_custom_call.1} parent=1 // pred_fallthru
      _
    // Predicated region
    $region10: #{tpu_custom_call.1} parent=1 // pred_check
      _
    $region11: #{tpu_custom_call.1} parent=1 // pred_check_branch
      %45 = sbr.rel (0) target = $region13
    $region12: #{tpu_custom_call.1} parent=1 // pred_region
      %s47 = ssub.s32 16, 16
      %48 = vsyncadd [#allocation6], %s47
      %s50 = sshll.u32 [#allocation7], 4
      %s51 = int_to_ptr.vmem [resolvable:$true] %s50
      %53 = dma.hbm_to_vmem [thread:$0]  %s2, 16, %s51, [#allocation6]
    $region13: #{tpu_custom_call.1} parent=1 // pred_fallthru
      _
    // Predicated region
    $region14: #{tpu_custom_call.1} parent=1 // pred_check
      _
    $region15: #{tpu_custom_call.1} parent=1 // pred_check_branch
      %55 = sbr.rel (0) target = $region17
    $region16: #{tpu_custom_call.1} parent=1 // pred_region
      %s57 = ssub.s32 3456, 3456
      %58 = vsyncadd [#allocation9], %s57
      %s59 = sshll.u32 [#allocation8], 4
      %s60 = int_to_ptr.vmem [resolvable:$true] %s59
      %65 = dma.hbm_to_vmem [thread:$0]  %s3, 3456, %s60, [#allocation9], 128, 128, 8
    $region17: #{tpu_custom_call.1} parent=1 // pred_fallthru
      _
    // Predicated region
    $region18: #{tpu_custom_call.1} parent=1 // pred_check
      _
    $region19: #{tpu_custom_call.1} parent=1 // pred_check_branch
      %67 = sbr.rel (0) target = $region21
    $region20: #{tpu_custom_call.1} parent=1 // pred_region
      %s69 = ssub.s32 384, 384
      %70 = vsyncadd [#allocation9], %s69
      %s71 = sshll.u32 [#allocation10], 4
      %s72 = int_to_ptr.vmem [resolvable:$true] %s71
      %77 = dma.hbm_to_vmem [thread:$0]  %s4, 384, %s72, [#allocation9], 128, 128, 8
    $region21: #{tpu_custom_call.1} parent=1 // pred_fallthru
      _
    // Predicated region
    $region22: #{tpu_custom_call.1} parent=1 // pred_check
      _
    $region23: #{tpu_custom_call.1} parent=1 // pred_check_branch
      %79 = sbr.rel (0) target = $region25
    $region24: #{tpu_custom_call.1} parent=1 // pred_region
      %s81 = ssub.s32 384, 384
      %82 = vsyncadd [#allocation12], %s81
      %s83 = sshll.u32 [#allocation11], 4
      %s84 = int_to_ptr.vmem [resolvable:$true] %s83
      %89 = dma.hbm_to_vmem [thread:$0]  %s5, 384, %s84, [#allocation12], 128, 128, 8
    $region25: #{tpu_custom_call.1} parent=1 // pred_fallthru
      _
    // Predicated region
    $region26: #{tpu_custom_call.1} parent=1 // pred_check
      _
    $region27: #{tpu_custom_call.1} parent=1 // pred_check_branch
      %91 = sbr.rel (0) target = $region29
    $region28: #{tpu_custom_call.1} parent=1 // pred_region
      %s93 = ssub.s32 128, 128
      %94 = vsyncadd [#allocation12], %s93
      %s96 = sshll.u32 [#allocation13], 4
      %s97 = int_to_ptr.vmem [resolvable:$true] %s96
      %99 = dma.hbm_to_vmem [thread:$0]  %s6, 128, %s97, [#allocation12]
    $region29: #{tpu_custom_call.1} parent=1 // pred_fallthru
      _
    // Predicated region
    $region30: #{tpu_custom_call.1} parent=1 // pred_check
      _
    $region31: #{tpu_custom_call.1} parent=1 // pred_check_branch
      %101 = sbr.rel (0) target = $region33
    $region32: #{tpu_custom_call.1} parent=1 // pred_region
      %s103 = ssub.s32 128, 128
      %104 = vsyncadd [#allocation15], %s103
      %s106 = sshll.u32 [#allocation14], 4
      %s107 = int_to_ptr.vmem [resolvable:$true] %s106
      %109 = dma.hbm_to_vmem [thread:$0]  %s7, 128, %s107, [#allocation15]
    $region33: #{tpu_custom_call.1} parent=1 // pred_fallthru
      _
    // Predicated region
    $region34: #{tpu_custom_call.1} parent=1 // pred_check
      _
    $region35: #{tpu_custom_call.1} parent=1 // pred_check_branch
      %111 = sbr.rel (0) target = $region37
    $region36: #{tpu_custom_call.1} parent=1 // pred_region
      %s113 = ssub.s32 128, 128
      %114 = vsyncadd [#allocation15], %s113
      %s116 = sshll.u32 [#allocation16], 4
      %s117 = int_to_ptr.vmem [resolvable:$true] %s116
      %119 = dma.hbm_to_vmem [thread:$0]  %s8, 128, %s117, [#allocation15]
    $region37: #{tpu_custom_call.1} parent=1 // pred_fallthru
      _
    // Predicated region
    $region38: #{tpu_custom_call.1} parent=1 // pred_check
      _
    $region39: #{tpu_custom_call.1} parent=1 // pred_check_branch
      %121 = sbr.rel (0) target = $region41
    $region40: #{tpu_custom_call.1} parent=1 // pred_region
      %s123 = ssub.s32 128, 128
      %124 = vsyncadd [#allocation18], %s123
      %s126 = sshll.u32 [#allocation17], 4
      %s127 = int_to_ptr.vmem [resolvable:$true] %s126
      %129 = dma.hbm_to_vmem [thread:$0]  %s9, 128, %s127, [#allocation18]
    $region41: #{tpu_custom_call.1} parent=1 // pred_fallthru
      _
    // Predicated region
    $region42: #{tpu_custom_call.1} parent=1 // pred_check
      _
    $region43: #{tpu_custom_call.1} parent=1 // pred_check_branch
      %131 = sbr.rel (0) target = $region45
    $region44: #{tpu_custom_call.1} parent=1 // pred_region
      %132 = dma.done [#allocation3], 128
    $region45: #{tpu_custom_call.1} parent=1 // pred_fallthru
      _
    // Predicated region
    $region46: #{tpu_custom_call.1} parent=1 // pred_check
      _
    $region47: #{tpu_custom_call.1} parent=1 // pred_check_branch
      %134 = sbr.rel (0) target = $region49
    $region48: #{tpu_custom_call.1} parent=1 // pred_region
      %135 = dma.done [#allocation6], 512
    $region49: #{tpu_custom_call.1} parent=1 // pred_fallthru
      _
    // Predicated region
    $region50: #{tpu_custom_call.1} parent=1 // pred_check
      _
    $region51: #{tpu_custom_call.1} parent=1 // pred_check_branch
      %137 = sbr.rel (0) target = $region53
    $region52: #{tpu_custom_call.1} parent=1 // pred_region
      %138 = dma.done [#allocation6], 16
    $region53: #{tpu_custom_call.1} parent=1 // pred_fallthru
      _
    // Predicated region
    $region54: #{tpu_custom_call.1} parent=1 // pred_check
      _
    $region55: #{tpu_custom_call.1} parent=1 // pred_check_branch
      %140 = sbr.rel (0) target = $region57
    $region56: #{tpu_custom_call.1} parent=1 // pred_region
      %141 = dma.done [#allocation9], 3456
    $region57: #{tpu_custom_call.1} parent=1 // pred_fallthru
      _
    // Predicated region
    $region58: #{tpu_custom_call.1} parent=1 // pred_check
      _
    $region59: #{tpu_custom_call.1} parent=1 // pred_check_branch
      %143 = sbr.rel (0) target = $region61
    $region60: #{tpu_custom_call.1} parent=1 // pred_region
      %144 = dma.done [#allocation9], 384
    $region61: #{tpu_custom_call.1} parent=1 // pred_fallthru
      _
    // Predicated region
    $region62: #{tpu_custom_call.1} parent=1 // pred_check
      _
    $region63: #{tpu_custom_call.1} parent=1 // pred_check_branch
      %146 = sbr.rel (0) target = $region65
    $region64: #{tpu_custom_call.1} parent=1 // pred_region
      %147 = dma.done [#allocation12], 384
    $region65: #{tpu_custom_call.1} parent=1 // pred_fallthru
      _
    // Predicated region
    $region66: #{tpu_custom_call.1} parent=1 // pred_check
      _
    $region67: #{tpu_custom_call.1} parent=1 // pred_check_branch
      %149 = sbr.rel (0) target = $region69
    $region68: #{tpu_custom_call.1} parent=1 // pred_region
      %150 = dma.done [#allocation12], 128
    $region69: #{tpu_custom_call.1} parent=1 // pred_fallthru
      _
    // Predicated region
    $region70: #{tpu_custom_call.1} parent=1 // pred_check
      _
    $region71: #{tpu_custom_call.1} parent=1 // pred_check_branch
      %152 = sbr.rel (0) target = $region73
    $region72: #{tpu_custom_call.1} parent=1 // pred_region
      %153 = dma.done [#allocation15], 128
    $region73: #{tpu_custom_call.1} parent=1 // pred_fallthru
      _
    // Predicated region
    $region74: #{tpu_custom_call.1} parent=1 // pred_check
      _
    $region75: #{tpu_custom_call.1} parent=1 // pred_check_branch
      %155 = sbr.rel (0) target = $region77
    $region76: #{tpu_custom_call.1} parent=1 // pred_region
      %156 = dma.done [#allocation15], 128
    $region77: #{tpu_custom_call.1} parent=1 // pred_fallthru
      _
    // Predicated region
    $region78: #{tpu_custom_call.1} parent=1 // pred_check
      _
    $region79: #{tpu_custom_call.1} parent=1 // pred_check_branch
      %158 = sbr.rel (0) target = $region81
    $region80: #{tpu_custom_call.1} parent=1 // pred_region
      %159 = dma.done [#allocation18], 128
    $region81: #{tpu_custom_call.1} parent=1 // pred_fallthru
      _
    %v160 = vld [vmem:[#allocation2] sm:$0xff]
    %v161 = vld [vmem:[#allocation8] sm:$0xff]
    %163 = vset.pattern.permute.xlu0 0
    %164 = vperm.xlu0 %163, %v161
    %v165 = vpop.permute.xlu0 %164
    %v167 = vmul.f32 %v160, %v165
    %v168 = vld [vmem:[#allocation5] sm:$0xff]
    %s169 = scalar_lea.vmem [#allocation8], 72
    %v170 = vld [vmem:[%s169] sm:$0xff]
    %172 = vset.pattern.permute.xlu0 0
    %173 = vperm.xlu0 %172, %v170
    %v174 = vpop.permute.xlu0 %173
    %v176 = vmul.f32 %v168, %v174
    %s177 = scalar_lea.vmem [#allocation8], 144
    %v178 = vld [vmem:[%s177] sm:$0xff]
    %180 = vset.pattern.permute.xlu0 0
    %181 = vperm.xlu0 %180, %v178
    %v182 = vpop.permute.xlu0 %181
    %v184 = vmul.f32 %v168, %v182
    %s185 = scalar_lea.vmem [#allocation8], 8
    %v186 = vld [vmem:[%s185] sm:$0xff]
    %188 = vset.pattern.permute.xlu0 0
    %189 = vperm.xlu0 %188, %v186
    %v190 = vpop.permute.xlu0 %189
    %v192 = vmul.f32 %v160, %v190
    %194 = vrot.lane.b32.xlu0 %v192, 127
    %v195 = vpop.permute.xlu0 %194
    %v197 = vadd.f32 %v167, %v195
    %s198 = scalar_lea.vmem [#allocation5], 8
    %v199 = vld [vmem:[%s198] sm:$0xff]
    %s200 = scalar_lea.vmem [#allocation8], 80
    %v201 = vld [vmem:[%s200] sm:$0xff]
    %203 = vset.pattern.permute.xlu0 0
    %204 = vperm.xlu0 %203, %v201
    %v205 = vpop.permute.xlu0 %204
    %v207 = vmul.f32 %v199, %v205
    %v208 = vadd.f32 %v176, %v207
    %s209 = scalar_lea.vmem [#allocation8], 152
    %v210 = vld [vmem:[%s209] sm:$0xff]
    %212 = vset.pattern.permute.xlu0 0
    %213 = vperm.xlu0 %212, %v210
    %v214 = vpop.permute.xlu0 %213
    %v216 = vmul.f32 %v199, %v214
    %v217 = vadd.f32 %v184, %v216
    %s218 = scalar_lea.vmem [#allocation8], 16
    %v219 = vld [vmem:[%s218] sm:$0xff]
    %221 = vset.pattern.permute.xlu0 0
    %222 = vperm.xlu0 %221, %v219
    %v223 = vpop.permute.xlu0 %222
    %v225 = vmul.f32 %v160, %v223
    %227 = vrot.lane.b32.xlu0 %v225, 126
    %v228 = vpop.permute.xlu0 %227
    %v230 = vadd.f32 %v197, %v228
    %s231 = scalar_lea.vmem [#allocation8], 88
    %v232 = vld [vmem:[%s231] sm:$0xff]
    %234 = vset.pattern.permute.xlu0 0
    %235 = vperm.xlu0 %234, %v232
    %v236 = vpop.permute.xlu0 %235
    %v238 = vmul.f32 %v168, %v236
    %240 = vrot.lane.b32.xlu0 %v238, 127
    %v241 = vpop.permute.xlu0 %240
    %v243 = vadd.f32 %v208, %v241
    %s244 = scalar_lea.vmem [#allocation8], 160
    %v245 = vld [vmem:[%s244] sm:$0xff]
    %247 = vset.pattern.permute.xlu0 0
    %248 = vperm.xlu0 %247, %v245
    %v249 = vpop.permute.xlu0 %248
    %v251 = vmul.f32 %v168, %v249
    %253 = vrot.lane.b32.xlu0 %v251, 127
    %v254 = vpop.permute.xlu0 %253
    %v256 = vadd.f32 %v217, %v254
    %s257 = scalar_lea.vmem [#allocation8], 24
    %v258 = vld [vmem:[%s257] sm:$0xff]
    %260 = vset.pattern.permute.xlu0 0
    %261 = vperm.xlu0 %260, %v258
    %v262 = vpop.permute.xlu0 %261
    %v264 = vmul.f32 %v160, %v262
    %266 = vrot.lane.b32.xlu0 %v264, 122
    %v267 = vpop.permute.xlu0 %266
    %v269 = vadd.f32 %v230, %v267
    %s270 = scalar_lea.vmem [#allocation5], 16
    %v271 = vld [vmem:[%s270] sm:$0xff]
    %s272 = scalar_lea.vmem [#allocation8], 96
    %v273 = vld [vmem:[%s272] sm:$0xff]
    %275 = vset.pattern.permute.xlu0 0
    %276 = vperm.xlu0 %275, %v273
    %v277 = vpop.permute.xlu0 %276
    %v279 = vmul.f32 %v271, %v277
    %v280 = vadd.f32 %v243, %v279
    %s281 = scalar_lea.vmem [#allocation8], 168
    %v282 = vld [vmem:[%s281] sm:$0xff]
    %284 = vset.pattern.permute.xlu0 0
    %285 = vperm.xlu0 %284, %v282
    %v286 = vpop.permute.xlu0 %285
    %v288 = vmul.f32 %v271, %v286
    %v289 = vadd.f32 %v256, %v288
    %s290 = scalar_lea.vmem [#allocation8], 32
    %v291 = vld [vmem:[%s290] sm:$0xff]
    %293 = vset.pattern.permute.xlu0 0
    %294 = vperm.xlu0 %293, %v291
    %v295 = vpop.permute.xlu0 %294
    %v297 = vmul.f32 %v160, %v295
    %299 = vrot.lane.b32.xlu0 %v297, 121
    %v300 = vpop.permute.xlu0 %299
    %v302 = vadd.f32 %v269, %v300
    %s303 = scalar_lea.vmem [#allocation5], 24
    %v304 = vld [vmem:[%s303] sm:$0xff]
    %s305 = scalar_lea.vmem [#allocation8], 104
    %v306 = vld [vmem:[%s305] sm:$0xff]
    %308 = vset.pattern.permute.xlu0 0
    %309 = vperm.xlu0 %308, %v306
    %v310 = vpop.permute.xlu0 %309
    %v312 = vmul.f32 %v304, %v310
    %v313 = vadd.f32 %v280, %v312
    %s314 = scalar_lea.vmem [#allocation8], 176
    %v315 = vld [vmem:[%s314] sm:$0xff]
    %317 = vset.pattern.permute.xlu0 0
    %318 = vperm.xlu0 %317, %v315
    %v319 = vpop.permute.xlu0 %318
    %v321 = vmul.f32 %v304, %v319
    %v322 = vadd.f32 %v289, %v321
    %s323 = scalar_lea.vmem [#allocation8], 40
    %v324 = vld [vmem:[%s323] sm:$0xff]
    %326 = vset.pattern.permute.xlu0 0
    %327 = vperm.xlu0 %326, %v324
    %v328 = vpop.permute.xlu0 %327
    %v330 = vmul.f32 %v160, %v328
    %332 = vrot.lane.b32.xlu0 %v330, 120
    %v333 = vpop.permute.xlu0 %332
    %v335 = vadd.f32 %v302, %v333
    %s336 = scalar_lea.vmem [#allocation8], 112
    %v337 = vld [vmem:[%s336] sm:$0xff]
    %339 = vset.pattern.permute.xlu0 0
    %340 = vperm.xlu0 %339, %v337
    %v341 = vpop.permute.xlu0 %340
    %v343 = vmul.f32 %v271, %v341
    %345 = vrot.lane.b32.xlu0 %v343, 127
    %v346 = vpop.permute.xlu0 %345
    %v348 = vadd.f32 %v313, %v346
    %s349 = scalar_lea.vmem [#allocation8], 184
    %v350 = vld [vmem:[%s349] sm:$0xff]
    %352 = vset.pattern.permute.xlu0 0
    %353 = vperm.xlu0 %352, %v350
    %v354 = vpop.permute.xlu0 %353
    %v356 = vmul.f32 %v271, %v354
    %358 = vrot.lane.b32.xlu0 %v356, 127
    %v359 = vpop.permute.xlu0 %358
    %v361 = vadd.f32 %v322, %v359
    %s362 = scalar_lea.vmem [#allocation8], 48
    %v363 = vld [vmem:[%s362] sm:$0xff]
    %365 = vset.pattern.permute.xlu0 0
    %366 = vperm.xlu0 %365, %v363
    %v367 = vpop.permute.xlu0 %366
    %v369 = vmul.f32 %v160, %v367
    %371 = vrot.lane.b32.xlu0 %v369, 116
    %v372 = vpop.permute.xlu0 %371
    %v374 = vadd.f32 %v335, %v372
    %s375 = scalar_lea.vmem [#allocation8], 120
    %v376 = vld [vmem:[%s375] sm:$0xff]
    %378 = vset.pattern.permute.xlu0 0
    %379 = vperm.xlu0 %378, %v376
    %v380 = vpop.permute.xlu0 %379
    %v382 = vmul.f32 %v168, %v380
    %384 = vrot.lane.b32.xlu0 %v382, 125
    %v385 = vpop.permute.xlu0 %384
    %v387 = vadd.f32 %v348, %v385
    %s388 = scalar_lea.vmem [#allocation8], 192
    %v389 = vld [vmem:[%s388] sm:$0xff]
    %391 = vset.pattern.permute.xlu0 0
    %392 = vperm.xlu0 %391, %v389
    %v393 = vpop.permute.xlu0 %392
    %v395 = vmul.f32 %v168, %v393
    %397 = vrot.lane.b32.xlu0 %v395, 125
    %v398 = vpop.permute.xlu0 %397
    %v400 = vadd.f32 %v361, %v398
    %s401 = scalar_lea.vmem [#allocation8], 56
    %v402 = vld [vmem:[%s401] sm:$0xff]
    %404 = vset.pattern.permute.xlu0 0
    %405 = vperm.xlu0 %404, %v402
    %v406 = vpop.permute.xlu0 %405
    %v408 = vmul.f32 %v160, %v406
    %410 = vrot.lane.b32.xlu0 %v408, 115
    %v411 = vpop.permute.xlu0 %410
    %v413 = vadd.f32 %v374, %v411
    %s414 = scalar_lea.vmem [#allocation8], 128
    %v415 = vld [vmem:[%s414] sm:$0xff]
    %417 = vset.pattern.permute.xlu0 0
    %418 = vperm.xlu0 %417, %v415
    %v419 = vpop.permute.xlu0 %418
    %v421 = vmul.f32 %v199, %v419
    %423 = vrot.lane.b32.xlu0 %v421, 125
    %v424 = vpop.permute.xlu0 %423
    %v426 = vadd.f32 %v387, %v424
    %s427 = scalar_lea.vmem [#allocation8], 200
    %v428 = vld [vmem:[%s427] sm:$0xff]
    %430 = vset.pattern.permute.xlu0 0
    %431 = vperm.xlu0 %430, %v428
    %v432 = vpop.permute.xlu0 %431
    %v434 = vmul.f32 %v199, %v432
    %436 = vrot.lane.b32.xlu0 %v434, 125
    %v437 = vpop.permute.xlu0 %436
    %v439 = vadd.f32 %v400, %v437
    %s440 = scalar_lea.vmem [#allocation8], 64
    %v441 = vld [vmem:[%s440] sm:$0xff]
    %443 = vset.pattern.permute.xlu0 0
    %444 = vperm.xlu0 %443, %v441
    %v445 = vpop.permute.xlu0 %444
    %v447 = vmul.f32 %v160, %v445
    %449 = vrot.lane.b32.xlu0 %v447, 114
    %v450 = vpop.permute.xlu0 %449
    %v452 = vadd.f32 %v413, %v450
    %s453 = scalar_lea.vmem [#allocation8], 136
    %v454 = vld [vmem:[%s453] sm:$0xff]
    %456 = vset.pattern.permute.xlu0 0
    %457 = vperm.xlu0 %456, %v454
    %v458 = vpop.permute.xlu0 %457
    %v460 = vmul.f32 %v168, %v458
    %462 = vrot.lane.b32.xlu0 %v460, 124
    %v463 = vpop.permute.xlu0 %462
    %v465 = vadd.f32 %v426, %v463
    %s466 = scalar_lea.vmem [#allocation8], 208
    %v467 = vld [vmem:[%s466] sm:$0xff]
    %469 = vset.pattern.permute.xlu0 0
    %470 = vperm.xlu0 %469, %v467
    %v471 = vpop.permute.xlu0 %470
    %v473 = vmul.f32 %v168, %v471
    %475 = vrot.lane.b32.xlu0 %v473, 124
    %v476 = vpop.permute.xlu0 %475
    %v478 = vadd.f32 %v439, %v476
    %v479 = vld [vmem:[#allocation10] sm:$0xff]
    %v480 = vld [vmem:[#allocation11] sm:$0xff]
    %482 = vset.pattern.permute.xlu0 0
    %483 = vperm.xlu0 %482, %v480
    %v484 = vpop.permute.xlu0 %483
    %vm486 = vcmask 64512
    %v488 = vsel %vm486, %v479, 0
    %490 = vmatprep.subr.mxu0 0.0
    %491 = vmatpush1.msra.mxu0 %v452
    %492 = vmatprep.subr.mxu0 0.0
    %493 = vmatpush1.msra.mxu0 0.0
    %494 = vmatprep.subr.mxu0 0.0
    %495 = vmatpush1.msra.mxu0 0.0
    %496 = vmatprep.subr.mxu0 0.0
    %497 = vmatpush1.msra.mxu0 0.0
    %498 = vmatprep.subr.mxu0 0.0
    %499 = vmatpush1.msra.mxu0 0.0
    %500 = vmatprep.subr.mxu0 0.0
    %501 = vmatpush1.msra.mxu0 0.0
    %502 = vmatprep.subr.mxu0 0.0
    %503 = vmatpush1.msra.mxu0 0.0
    %504 = vmatprep.subr.mxu0 0.0
    %505 = vmatpush1.msra.mxu0 0.0
    %506 = vmatprep.subr.mxu0 0.0
    %507 = vmatpush1.msra.mxu0 0.0
    %508 = vmatprep.subr.mxu0 0.0
    %509 = vmatpush1.msra.mxu0 0.0
    %510 = vmatprep.subr.mxu0 0.0
    %511 = vmatpush1.msra.mxu0 0.0
    %512 = vmatprep.subr.mxu0 0.0
    %513 = vmatpush1.msra.mxu0 0.0
    %514 = vmatprep.subr.mxu0 0.0
    %515 = vmatpush1.msra.mxu0 0.0
    %516 = vmatprep.subr.mxu0 0.0
    %517 = vmatpush1.msra.mxu0 0.0
    %518 = vmatprep.subr.mxu0 0.0
    %519 = vmatpush1.msra.mxu0 0.0
    %520 = vmatprep.subr.mxu0 0.0
    %521 = vmatpush1.msra.mxu0 0.0
    %522 = vmatprep.subr.mxu0 0.0
    %523 = vmatpush1.msra.mxu0 0.0
    %524 = vmatprep.subr.mxu0 0.0
    %525 = vmatpush1.msra.mxu0 0.0
    %526 = vmatprep.subr.mxu0 0.0
    %527 = vmatpush1.msra.mxu0 0.0
    %528 = vmatprep.subr.mxu0 0.0
    %529 = vmatpush1.msra.mxu0 0.0
    %530 = vmatprep.subr.mxu0 0.0
    %531 = vmatpush1.msra.mxu0 0.0
    %532 = vmatprep.subr.mxu0 0.0
    %533 = vmatpush1.msra.mxu0 0.0
    %534 = vmatprep.subr.mxu0 0.0
    %535 = vmatpush1.msra.mxu0 0.0
    %536 = vmatprep.subr.mxu0 0.0
    %537 = vmatpush1.msra.mxu0 0.0
    %538 = vmatprep.subr.mxu0 0.0
    %539 = vmatpush1.msra.mxu0 0.0
    %540 = vmatprep.subr.mxu0 0.0
    %541 = vmatpush1.msra.mxu0 0.0
    %542 = vmatprep.subr.mxu0 0.0
    %543 = vmatpush1.msra.mxu0 0.0
    %544 = vmatprep.subr.mxu0 0.0
    %545 = vmatpush1.msra.mxu0 0.0
    %546 = vmatprep.subr.mxu0 0.0
    %547 = vmatpush1.msra.mxu0 0.0
    %548 = vmatprep.subr.mxu0 0.0
    %549 = vmatpush1.msra.mxu0 0.0
    %550 = vmatprep.subr.mxu0 0.0
    %551 = vmatpush1.msra.mxu0 0.0
    %552 = vmatprep.subr.mxu0 0.0
    %553 = vmatpush1.msra.mxu0 0.0
    %554 = vmatprep.mubr.f32.mxu0 0.0
    %555 = vmatmul.mubr.f32.gmra.mrb[0].mxu0 %v488
    %v556 = vpop.f32.mrb[0].mxu0
    %v557 = vadd.f32 %v484, %v556
    %v558 = vpop.f32.mrb[0].mxu0
    %559 = vdwg.mxu0
    %v560 = vmul.f32 %v557, 0.5
    %v561 = vmul.f32 %v557, 0.70710677
    %v562 = vand.u32 2147483647, %v561
    %v563 = vmul.f32 %v562, 0.3275911
    %v564 = vadd.f32 %v563, 1.0
    %v565 = vrcp.pop %v564
    %v566 = vmul.f32 %v564, %v565
    %v567 = vsub.f32 2.0, %v566
    %v568 = vmul.f32 %v565, %v567
    %v569 = vmul.f32 %v568, 1.0614054
    %v570 = vadd.f32 %v569, -1.4531521
    %v571 = vmul.f32 %v570, %v568
    %v572 = vadd.f32 %v571, 1.4214138
    %v573 = vmul.f32 %v572, %v568
    %v574 = vadd.f32 %v573, -0.28449672
    %v575 = vmul.f32 %v574, %v568
    %v576 = vadd.f32 %v575, 0.2548296
    %v577 = vmul.f32 %v576, %v568
    %v578 = vsub.f32 0.0, %v562
    %v579 = vmul.f32 %v578, %v562
    %v580 = vmul.f32 %v579, 1.442695
    %v581 = vpow.pop %v580
    %v582 = vmul.f32 %v577, %v581
    %v583 = vsub.f32 1.0, %v582
    %vm584 = vcmp.ge.f32.partialorder %v561, 0.0
    %v585 = vsub.f32 0.0, %v583
    %v586 = vsel %vm584, %v583, %v585
    %v587 = vadd.f32 %v586, 1.0
    %v588 = vmul.f32 %v560, %v587
    %s589 = scalar_lea.vmem [#allocation10], 8
    %v590 = vld [vmem:[%s589] sm:$0xff]
    %s591 = scalar_lea.vmem [#allocation11], 8
    %v592 = vld [vmem:[%s591] sm:$0xff]
    %594 = vset.pattern.permute.xlu0 0
    %595 = vperm.xlu0 %594, %v592
    %v596 = vpop.permute.xlu0 %595
    %v599 = vsel %vm486, %v590, 0
    %601 = vmatprep.subr.mxu0 0.0
    %602 = vmatpush1.msra.mxu0 %v465
    %603 = vmatprep.subr.mxu0 0.0
    %604 = vmatpush1.msra.mxu0 0.0
    %605 = vmatprep.subr.mxu0 0.0
    %606 = vmatpush1.msra.mxu0 0.0
    %607 = vmatprep.subr.mxu0 0.0
    %608 = vmatpush1.msra.mxu0 0.0
    %609 = vmatprep.subr.mxu0 0.0
    %610 = vmatpush1.msra.mxu0 0.0
    %611 = vmatprep.subr.mxu0 0.0
    %612 = vmatpush1.msra.mxu0 0.0
    %613 = vmatprep.subr.mxu0 0.0
    %614 = vmatpush1.msra.mxu0 0.0
    %615 = vmatprep.subr.mxu0 0.0
    %616 = vmatpush1.msra.mxu0 0.0
    %617 = vmatprep.subr.mxu0 0.0
    %618 = vmatpush1.msra.mxu0 0.0
    %619 = vmatprep.subr.mxu0 0.0
    %620 = vmatpush1.msra.mxu0 0.0
    %621 = vmatprep.subr.mxu0 0.0
    %622 = vmatpush1.msra.mxu0 0.0
    %623 = vmatprep.subr.mxu0 0.0
    %624 = vmatpush1.msra.mxu0 0.0
    %625 = vmatprep.subr.mxu0 0.0
    %626 = vmatpush1.msra.mxu0 0.0
    %627 = vmatprep.subr.mxu0 0.0
    %628 = vmatpush1.msra.mxu0 0.0
    %629 = vmatprep.subr.mxu0 0.0
    %630 = vmatpush1.msra.mxu0 0.0
    %631 = vmatprep.subr.mxu0 0.0
    %632 = vmatpush1.msra.mxu0 0.0
    %633 = vmatprep.subr.mxu0 0.0
    %634 = vmatpush1.msra.mxu0 0.0
    %635 = vmatprep.subr.mxu0 0.0
    %636 = vmatpush1.msra.mxu0 0.0
    %637 = vmatprep.subr.mxu0 0.0
    %638 = vmatpush1.msra.mxu0 0.0
    %639 = vmatprep.subr.mxu0 0.0
    %640 = vmatpush1.msra.mxu0 0.0
    %641 = vmatprep.subr.mxu0 0.0
    %642 = vmatpush1.msra.mxu0 0.0
    %643 = vmatprep.subr.mxu0 0.0
    %644 = vmatpush1.msra.mxu0 0.0
    %645 = vmatprep.subr.mxu0 0.0
    %646 = vmatpush1.msra.mxu0 0.0
    %647 = vmatprep.subr.mxu0 0.0
    %648 = vmatpush1.msra.mxu0 0.0
    %649 = vmatprep.subr.mxu0 0.0
    %650 = vmatpush1.msra.mxu0 0.0
    %651 = vmatprep.subr.mxu0 0.0
    %652 = vmatpush1.msra.mxu0 0.0
    %653 = vmatprep.subr.mxu0 0.0
    %654 = vmatpush1.msra.mxu0 0.0
    %655 = vmatprep.subr.mxu0 0.0
    %656 = vmatpush1.msra.mxu0 0.0
    %657 = vmatprep.subr.mxu0 0.0
    %658 = vmatpush1.msra.mxu0 0.0
    %659 = vmatprep.subr.mxu0 0.0
    %660 = vmatpush1.msra.mxu0 0.0
    %661 = vmatprep.subr.mxu0 0.0
    %662 = vmatpush1.msra.mxu0 0.0
    %663 = vmatprep.subr.mxu0 0.0
    %664 = vmatpush1.msra.mxu0 0.0
    %665 = vmatprep.mubr.f32.mxu0 0.0
    %666 = vmatmul.mubr.f32.gmra.mrb[0].mxu0 %v599
    %v667 = vpop.f32.mrb[0].mxu0
    %v668 = vadd.f32 %v596, %v667
    %v669 = vpop.f32.mrb[0].mxu0
    %670 = vdwg.mxu0
    %v671 = vmul.f32 %v668, 0.5
    %v672 = vmul.f32 %v668, 0.70710677
    %v673 = vand.u32 2147483647, %v672
    %v674 = vmul.f32 %v673, 0.3275911
    %v675 = vadd.f32 %v674, 1.0
    %v676 = vrcp.pop %v675
    %v677 = vmul.f32 %v675, %v676
    %v678 = vsub.f32 2.0, %v677
    %v679 = vmul.f32 %v676, %v678
    %v680 = vmul.f32 %v679, 1.0614054
    %v681 = vadd.f32 %v680, -1.4531521
    %v682 = vmul.f32 %v681, %v679
    %v683 = vadd.f32 %v682, 1.4214138
    %v684 = vmul.f32 %v683, %v679
    %v685 = vadd.f32 %v684, -0.28449672
    %v686 = vmul.f32 %v685, %v679
    %v687 = vadd.f32 %v686, 0.2548296
    %v688 = vmul.f32 %v687, %v679
    %v689 = vsub.f32 0.0, %v673
    %v690 = vmul.f32 %v689, %v673
    %v691 = vmul.f32 %v690, 1.442695
    %v692 = vpow.pop %v691
    %v693 = vmul.f32 %v688, %v692
    %v694 = vsub.f32 1.0, %v693
    %vm695 = vcmp.ge.f32.partialorder %v672, 0.0
    %v696 = vsub.f32 0.0, %v694
    %v697 = vsel %vm695, %v694, %v696
    %v698 = vadd.f32 %v697, 1.0
    %v699 = vmul.f32 %v671, %v698
    %s700 = scalar_lea.vmem [#allocation10], 16
    %v701 = vld [vmem:[%s700] sm:$0xff]
    %s702 = scalar_lea.vmem [#allocation11], 16
    %v703 = vld [vmem:[%s702] sm:$0xff]
    %705 = vset.pattern.permute.xlu0 0
    %706 = vperm.xlu0 %705, %v703
    %v707 = vpop.permute.xlu0 %706
    %v710 = vsel %vm486, %v701, 0
    %712 = vmatprep.subr.mxu0 0.0
    %713 = vmatpush1.msra.mxu0 %v478
    %714 = vmatprep.subr.mxu0 0.0
    %715 = vmatpush1.msra.mxu0 0.0
    %716 = vmatprep.subr.mxu0 0.0
    %717 = vmatpush1.msra.mxu0 0.0
    %718 = vmatprep.subr.mxu0 0.0
    %719 = vmatpush1.msra.mxu0 0.0
    %720 = vmatprep.subr.mxu0 0.0
    %721 = vmatpush1.msra.mxu0 0.0
    %722 = vmatprep.subr.mxu0 0.0
    %723 = vmatpush1.msra.mxu0 0.0
    %724 = vmatprep.subr.mxu0 0.0
    %725 = vmatpush1.msra.mxu0 0.0
    %726 = vmatprep.subr.mxu0 0.0
    %727 = vmatpush1.msra.mxu0 0.0
    %728 = vmatprep.subr.mxu0 0.0
    %729 = vmatpush1.msra.mxu0 0.0
    %730 = vmatprep.subr.mxu0 0.0
    %731 = vmatpush1.msra.mxu0 0.0
    %732 = vmatprep.subr.mxu0 0.0
    %733 = vmatpush1.msra.mxu0 0.0
    %734 = vmatprep.subr.mxu0 0.0
    %735 = vmatpush1.msra.mxu0 0.0
    %736 = vmatprep.subr.mxu0 0.0
    %737 = vmatpush1.msra.mxu0 0.0
    %738 = vmatprep.subr.mxu0 0.0
    %739 = vmatpush1.msra.mxu0 0.0
    %740 = vmatprep.subr.mxu0 0.0
    %741 = vmatpush1.msra.mxu0 0.0
    %742 = vmatprep.subr.mxu0 0.0
    %743 = vmatpush1.msra.mxu0 0.0
    %744 = vmatprep.subr.mxu0 0.0
    %745 = vmatpush1.msra.mxu0 0.0
    %746 = vmatprep.subr.mxu0 0.0
    %747 = vmatpush1.msra.mxu0 0.0
    %748 = vmatprep.subr.mxu0 0.0
    %749 = vmatpush1.msra.mxu0 0.0
    %750 = vmatprep.subr.mxu0 0.0
    %751 = vmatpush1.msra.mxu0 0.0
    %752 = vmatprep.subr.mxu0 0.0
    %753 = vmatpush1.msra.mxu0 0.0
    %754 = vmatprep.subr.mxu0 0.0
    %755 = vmatpush1.msra.mxu0 0.0
    %756 = vmatprep.subr.mxu0 0.0
    %757 = vmatpush1.msra.mxu0 0.0
    %758 = vmatprep.subr.mxu0 0.0
    %759 = vmatpush1.msra.mxu0 0.0
    %760 = vmatprep.subr.mxu0 0.0
    %761 = vmatpush1.msra.mxu0 0.0
    %762 = vmatprep.subr.mxu0 0.0
    %763 = vmatpush1.msra.mxu0 0.0
    %764 = vmatprep.subr.mxu0 0.0
    %765 = vmatpush1.msra.mxu0 0.0
    %766 = vmatprep.subr.mxu0 0.0
    %767 = vmatpush1.msra.mxu0 0.0
    %768 = vmatprep.subr.mxu0 0.0
    %769 = vmatpush1.msra.mxu0 0.0
    %770 = vmatprep.subr.mxu0 0.0
    %771 = vmatpush1.msra.mxu0 0.0
    %772 = vmatprep.subr.mxu0 0.0
    %773 = vmatpush1.msra.mxu0 0.0
    %774 = vmatprep.subr.mxu0 0.0
    %775 = vmatpush1.msra.mxu0 0.0
    %776 = vmatprep.mubr.f32.mxu0 0.0
    %777 = vmatmul.mubr.f32.gmra.mrb[0].mxu0 %v710
    %v778 = vpop.f32.mrb[0].mxu0
    %v779 = vadd.f32 %v707, %v778
    %v780 = vpop.f32.mrb[0].mxu0
    %781 = vdwg.mxu0
    %v782 = vmul.f32 %v779, 0.5
    %v783 = vmul.f32 %v779, 0.70710677
    %v784 = vand.u32 2147483647, %v783
    %v785 = vmul.f32 %v784, 0.3275911
    %v786 = vadd.f32 %v785, 1.0
    %v787 = vrcp.pop %v786
    %v788 = vmul.f32 %v786, %v787
    %v789 = vsub.f32 2.0, %v788
    %v790 = vmul.f32 %v787, %v789
    %v791 = vmul.f32 %v790, 1.0614054
    %v792 = vadd.f32 %v791, -1.4531521
    %v793 = vmul.f32 %v792, %v790
    %v794 = vadd.f32 %v793, 1.4214138
    %v795 = vmul.f32 %v794, %v790
    %v796 = vadd.f32 %v795, -0.28449672
    %v797 = vmul.f32 %v796, %v790
    %v798 = vadd.f32 %v797, 0.2548296
    %v799 = vmul.f32 %v798, %v790
    %v800 = vsub.f32 0.0, %v784
    %v801 = vmul.f32 %v800, %v784
    %v802 = vmul.f32 %v801, 1.442695
    %v803 = vpow.pop %v802
    %v804 = vmul.f32 %v799, %v803
    %v805 = vsub.f32 1.0, %v804
    %vm806 = vcmp.ge.f32.partialorder %v783, 0.0
    %v807 = vsub.f32 0.0, %v805
    %v808 = vsel %vm806, %v805, %v807
    %v809 = vadd.f32 %v808, 1.0
    %v810 = vmul.f32 %v782, %v809
    %vm811 = vcmask 195584
    %v812 = vsel %vm811, %v588, -inf
    %v813 = vrot.slane %v812, 4
    %v814 = vmax.f32 %v812, %v813
    %v815 = vrot.slane %v814, 2
    %v816 = vmax.f32 %v814, %v815
    %v817 = vrot.slane %v816, 1
    %v818 = vmax.f32 %v816, %v817
    %v819 = vsub.f32 %v588, %v818
    %v820 = vmul.f32 %v819, 1.442695
    %v821 = vpow.pop %v820
    %v822 = vld [vmem:[#allocation16] sm:$0xff]
    %v824 = vsel %vm486, %v822, 0
    %826 = vmatprep.subr.mxu0 0.0
    %827 = vmatpush1.msra.mxu0 %v821
    %828 = vmatprep.subr.mxu0 0.0
    %829 = vmatpush1.msra.mxu0 0.0
    %830 = vmatprep.subr.mxu0 0.0
    %831 = vmatpush1.msra.mxu0 0.0
    %832 = vmatprep.subr.mxu0 0.0
    %833 = vmatpush1.msra.mxu0 0.0
    %834 = vmatprep.subr.mxu0 0.0
    %835 = vmatpush1.msra.mxu0 0.0
    %836 = vmatprep.subr.mxu0 0.0
    %837 = vmatpush1.msra.mxu0 0.0
    %838 = vmatprep.subr.mxu0 0.0
    %839 = vmatpush1.msra.mxu0 0.0
    %840 = vmatprep.subr.mxu0 0.0
    %841 = vmatpush1.msra.mxu0 0.0
    %842 = vmatprep.subr.mxu0 0.0
    %843 = vmatpush1.msra.mxu0 0.0
    %844 = vmatprep.subr.mxu0 0.0
    %845 = vmatpush1.msra.mxu0 0.0
    %846 = vmatprep.subr.mxu0 0.0
    %847 = vmatpush1.msra.mxu0 0.0
    %848 = vmatprep.subr.mxu0 0.0
    %849 = vmatpush1.msra.mxu0 0.0
    %850 = vmatprep.subr.mxu0 0.0
    %851 = vmatpush1.msra.mxu0 0.0
    %852 = vmatprep.subr.mxu0 0.0
    %853 = vmatpush1.msra.mxu0 0.0
    %854 = vmatprep.subr.mxu0 0.0
    %855 = vmatpush1.msra.mxu0 0.0
    %856 = vmatprep.subr.mxu0 0.0
    %857 = vmatpush1.msra.mxu0 0.0
    %858 = vmatprep.subr.mxu0 0.0
    %859 = vmatpush1.msra.mxu0 0.0
    %860 = vmatprep.subr.mxu0 0.0
    %861 = vmatpush1.msra.mxu0 0.0
    %862 = vmatprep.subr.mxu0 0.0
    %863 = vmatpush1.msra.mxu0 0.0
    %864 = vmatprep.subr.mxu0 0.0
    %865 = vmatpush1.msra.mxu0 0.0
    %866 = vmatprep.subr.mxu0 0.0
    %867 = vmatpush1.msra.mxu0 0.0
    %868 = vmatprep.subr.mxu0 0.0
    %869 = vmatpush1.msra.mxu0 0.0
    %870 = vmatprep.subr.mxu0 0.0
    %871 = vmatpush1.msra.mxu0 0.0
    %872 = vmatprep.subr.mxu0 0.0
    %873 = vmatpush1.msra.mxu0 0.0
    %874 = vmatprep.subr.mxu0 0.0
    %875 = vmatpush1.msra.mxu0 0.0
    %876 = vmatprep.subr.mxu0 0.0
    %877 = vmatpush1.msra.mxu0 0.0
    %878 = vmatprep.subr.mxu0 0.0
    %879 = vmatpush1.msra.mxu0 0.0
    %880 = vmatprep.subr.mxu0 0.0
    %881 = vmatpush1.msra.mxu0 0.0
    %882 = vmatprep.subr.mxu0 0.0
    %883 = vmatpush1.msra.mxu0 0.0
    %884 = vmatprep.subr.mxu0 0.0
    %885 = vmatpush1.msra.mxu0 0.0
    %886 = vmatprep.subr.mxu0 0.0
    %887 = vmatpush1.msra.mxu0 0.0
    %888 = vmatprep.subr.mxu0 0.0
    %889 = vmatpush1.msra.mxu0 0.0
    %890 = vmatprep.mubr.f32.mxu0 0.0
    %891 = vmatmul.mubr.f32.gmra.mrb[0].mxu0 %v824
    %v892 = vpop.f32.mrb[0].mxu0
    %v893 = vadd.f32 0.0, %v892
    %v894 = vpop.f32.mrb[0].mxu0
    %895 = vdwg.mxu0
    %v896 = vrcp.pop %v893
    %v897 = vmul.f32 %v893, %v896
    %v898 = vsub.f32 2.0, %v897
    %v899 = vmul.f32 %v896, %v898
    %v900 = vmul.f32 %v821, %v899
    %v901 = vld [vmem:[#allocation7] sm:$0x1]
    %v903 = vlaneseq
    %v904 = vshrl.u32 %v903, 7
    %v905 = vsub.s32 0, %v904
    %v906 = vrot.slane %v901, %v905
    %v908 = vadd.f32 %v699, %v906
    %vm909 = vcmask 48128
    %v910 = vsel %vm909, %v908, -inf
    %911 = vmax.xlane.f32.xlu0 %v910
    %v912 = vpop.xlane.xlu0 %911
    %v913 = vsub.f32 %v908, %v912
    %v914 = vmul.f32 %v913, 1.442695
    %v915 = vpow.pop %v914
    %v916 = vsel %vm909, %v915, 0.0
    %917 = vadd.xlane.f32.xlu0 %v916
    %v918 = vpop.xlane.xlu0 %917
    %v919 = vrcp.pop %v918
    %v920 = vmul.f32 %v918, %v919
    %v921 = vsub.f32 2.0, %v920
    %v922 = vmul.f32 %v919, %v921
    %v923 = vmul.f32 %v915, %v922
    %v925 = vsel %vm909, %v810, 0
    %v928 = vsel %vm909, %v923, 0
    %930 = vmatprep.subr.mxu0 0.0
    %931 = vmatpush1.xpose.msra.mxu0 %v928
    %932 = vmatprep.subr.mxu0 0.0
    %933 = vmatpush1.xpose.msra.mxu0 0.0
    %934 = vmatprep.subr.mxu0 0.0
    %935 = vmatpush1.xpose.msra.mxu0 0.0
    %936 = vmatprep.subr.mxu0 0.0
    %937 = vmatpush1.xpose.msra.mxu0 0.0
    %938 = vmatprep.subr.mxu0 0.0
    %939 = vmatpush1.xpose.msra.mxu0 0.0
    %940 = vmatprep.subr.mxu0 0.0
    %941 = vmatpush1.xpose.msra.mxu0 0.0
    %942 = vmatprep.subr.mxu0 0.0
    %943 = vmatpush1.xpose.msra.mxu0 0.0
    %944 = vmatprep.subr.mxu0 0.0
    %945 = vmatpush1.xpose.msra.mxu0 0.0
    %946 = vmatprep.subr.mxu0 0.0
    %947 = vmatpush1.xpose.msra.mxu0 0.0
    %948 = vmatprep.subr.mxu0 0.0
    %949 = vmatpush1.xpose.msra.mxu0 0.0
    %950 = vmatprep.subr.mxu0 0.0
    %951 = vmatpush1.xpose.msra.mxu0 0.0
    %952 = vmatprep.subr.mxu0 0.0
    %953 = vmatpush1.xpose.msra.mxu0 0.0
    %954 = vmatprep.subr.mxu0 0.0
    %955 = vmatpush1.xpose.msra.mxu0 0.0
    %956 = vmatprep.subr.mxu0 0.0
    %957 = vmatpush1.xpose.msra.mxu0 0.0
    %958 = vmatprep.subr.mxu0 0.0
    %959 = vmatpush1.xpose.msra.mxu0 0.0
    %960 = vmatprep.subr.mxu0 0.0
    %961 = vmatpush1.xpose.msra.mxu0 0.0
    %962 = vmatprep.subr.mxu0 0.0
    %963 = vmatpush1.xpose.msra.mxu0 0.0
    %964 = vmatprep.subr.mxu0 0.0
    %965 = vmatpush1.xpose.msra.mxu0 0.0
    %966 = vmatprep.subr.mxu0 0.0
    %967 = vmatpush1.xpose.msra.mxu0 0.0
    %968 = vmatprep.subr.mxu0 0.0
    %969 = vmatpush1.xpose.msra.mxu0 0.0
    %970 = vmatprep.subr.mxu0 0.0
    %971 = vmatpush1.xpose.msra.mxu0 0.0
    %972 = vmatprep.subr.mxu0 0.0
    %973 = vmatpush1.xpose.msra.mxu0 0.0
    %974 = vmatprep.subr.mxu0 0.0
    %975 = vmatpush1.xpose.msra.mxu0 0.0
    %976 = vmatprep.subr.mxu0 0.0
    %977 = vmatpush1.xpose.msra.mxu0 0.0
    %978 = vmatprep.subr.mxu0 0.0
    %979 = vmatpush1.xpose.msra.mxu0 0.0
    %980 = vmatprep.subr.mxu0 0.0
    %981 = vmatpush1.xpose.msra.mxu0 0.0
    %982 = vmatprep.subr.mxu0 0.0
    %983 = vmatpush1.xpose.msra.mxu0 0.0
    %984 = vmatprep.subr.mxu0 0.0
    %985 = vmatpush1.xpose.msra.mxu0 0.0
    %986 = vmatprep.subr.mxu0 0.0
    %987 = vmatpush1.xpose.msra.mxu0 0.0
    %988 = vmatprep.subr.mxu0 0.0
    %989 = vmatpush1.xpose.msra.mxu0 0.0
    %990 = vmatprep.subr.mxu0 0.0
    %991 = vmatpush1.xpose.msra.mxu0 0.0
    %992 = vmatprep.subr.mxu0 0.0
    %993 = vmatpush1.xpose.msra.mxu0 0.0
    %994 = vmatprep.mubr.f32.mxu0 0.0
    %995 = vmatmul.mubr.f32.gmra.mrb[0].mxu0 %v925
    %v996 = vpop.f32.mrb[0].mxu0
    %v997 = vadd.f32 0.0, %v996
    %v998 = vpop.f32.mrb[0].mxu0
    %999 = vdwg.mxu0
    %v1000 = vld [vmem:[#allocation17] sm:$0xff]
    %v1001 = vmul.f32 %v997, %v1000
    %v1002 = vld [vmem:[#allocation13] sm:$0xff]
    %1004 = vset.pattern.permute.xlu0 0
    %1005 = vperm.xlu0 %1004, %v1002
    %v1006 = vpop.permute.xlu0 %1005
    %v1008 = vmul.f32 %v160, %v1006
    %1010 = vrot.lane.b32.xlu0 %v1008, 121
    %v1011 = vpop.permute.xlu0 %1010
    %v1014 = vsel %vm486, %v1001, 0
    %1016 = vmatprep.subr.mxu0 0.0
    %1017 = vmatpush1.msra.mxu0 %v900
    %1018 = vmatprep.subr.mxu0 0.0
    %1019 = vmatpush1.msra.mxu0 0.0
    %1020 = vmatprep.subr.mxu0 0.0
    %1021 = vmatpush1.msra.mxu0 0.0
    %1022 = vmatprep.subr.mxu0 0.0
    %1023 = vmatpush1.msra.mxu0 0.0
    %1024 = vmatprep.subr.mxu0 0.0
    %1025 = vmatpush1.msra.mxu0 0.0
    %1026 = vmatprep.subr.mxu0 0.0
    %1027 = vmatpush1.msra.mxu0 0.0
    %1028 = vmatprep.subr.mxu0 0.0
    %1029 = vmatpush1.msra.mxu0 0.0
    %1030 = vmatprep.subr.mxu0 0.0
    %1031 = vmatpush1.msra.mxu0 0.0
    %1032 = vmatprep.subr.mxu0 0.0
    %1033 = vmatpush1.msra.mxu0 0.0
    %1034 = vmatprep.subr.mxu0 0.0
    %1035 = vmatpush1.msra.mxu0 0.0
    %1036 = vmatprep.subr.mxu0 0.0
    %1037 = vmatpush1.msra.mxu0 0.0
    %1038 = vmatprep.subr.mxu0 0.0
    %1039 = vmatpush1.msra.mxu0 0.0
    %1040 = vmatprep.subr.mxu0 0.0
    %1041 = vmatpush1.msra.mxu0 0.0
    %1042 = vmatprep.subr.mxu0 0.0
    %1043 = vmatpush1.msra.mxu0 0.0
    %1044 = vmatprep.subr.mxu0 0.0
    %1045 = vmatpush1.msra.mxu0 0.0
    %1046 = vmatprep.subr.mxu0 0.0
    %1047 = vmatpush1.msra.mxu0 0.0
    %1048 = vmatprep.subr.mxu0 0.0
    %1049 = vmatpush1.msra.mxu0 0.0
    %1050 = vmatprep.subr.mxu0 0.0
    %1051 = vmatpush1.msra.mxu0 0.0
    %1052 = vmatprep.subr.mxu0 0.0
    %1053 = vmatpush1.msra.mxu0 0.0
    %1054 = vmatprep.subr.mxu0 0.0
    %1055 = vmatpush1.msra.mxu0 0.0
    %1056 = vmatprep.subr.mxu0 0.0
    %1057 = vmatpush1.msra.mxu0 0.0
    %1058 = vmatprep.subr.mxu0 0.0
    %1059 = vmatpush1.msra.mxu0 0.0
    %1060 = vmatprep.subr.mxu0 0.0
    %1061 = vmatpush1.msra.mxu0 0.0
    %1062 = vmatprep.subr.mxu0 0.0
    %1063 = vmatpush1.msra.mxu0 0.0
    %1064 = vmatprep.subr.mxu0 0.0
    %1065 = vmatpush1.msra.mxu0 0.0
    %1066 = vmatprep.subr.mxu0 0.0
    %1067 = vmatpush1.msra.mxu0 0.0
    %1068 = vmatprep.subr.mxu0 0.0
    %1069 = vmatpush1.msra.mxu0 0.0
    %1070 = vmatprep.subr.mxu0 0.0
    %1071 = vmatpush1.msra.mxu0 0.0
    %1072 = vmatprep.subr.mxu0 0.0
    %1073 = vmatpush1.msra.mxu0 0.0
    %1074 = vmatprep.subr.mxu0 0.0
    %1075 = vmatpush1.msra.mxu0 0.0
    %1076 = vmatprep.subr.mxu0 0.0
    %1077 = vmatpush1.msra.mxu0 0.0
    %1078 = vmatprep.subr.mxu0 0.0
    %1079 = vmatpush1.msra.mxu0 0.0
    %1080 = vmatprep.mubr.f32.mxu0 0.0
    %1081 = vmatmul.mubr.f32.gmra.mrb[0].mxu0 %v1014
    %v1082 = vpop.f32.mrb[0].mxu0
    %v1083 = vadd.f32 %v1011, %v1082
    %v1084 = vpop.f32.mrb[0].mxu0
    %1085 = vdwg.mxu0
    %v1086 = vld [vmem:[#allocation14] sm:$0xff]
    %1088 = vset.pattern.permute.xlu0 0
    %1089 = vperm.xlu0 %1088, %v1086
    %v1090 = vpop.permute.xlu0 %1089
    %v1092 = vadd.f32 %v1083, %v1090
    %1093 = vst.msk [vmem:[#allocation19] sm:$0xff] %vm811, %v1092
    // Predicated region
    $region82: #{tpu_custom_call.1} parent=1 // pred_check
      _
    $region83: #{tpu_custom_call.1} parent=1 // pred_check_branch
      %1095 = sbr.rel (0) target = $region85
    $region84: #{tpu_custom_call.1} parent=1 // pred_region
      %s1097 = ssub.s32 128, 128
      %1098 = vsyncadd [#allocation4], %s1097
      %s1100 = sshll.u32 [#allocation19], 4
      %s1101 = int_to_ptr.vmem [resolvable:$true] %s1100
      %1103 = dma.vmem_to_hbm [thread:$0]  %s1101, 128, %s10, [#allocation4]
    $region85: #{tpu_custom_call.1} parent=1 // pred_fallthru
      _
    // Predicated region
    $region86: #{tpu_custom_call.1} parent=1 // pred_check
      _
    $region87: #{tpu_custom_call.1} parent=1 // pred_check_branch
      %1105 = sbr.rel (0) target = $region89
    $region88: #{tpu_custom_call.1} parent=1 // pred_region
      %1106 = dma.done [#allocation4], 128
    $region89: #{tpu_custom_call.1} parent=1 // pred_fallthru
      _
    %1107 = vsyncpa [#allocation3], 1
    %1108 = vsyncpa [#allocation6], 1
    %1109 = vsyncpa [#allocation9], 1
    %1110 = vsyncpa [#allocation12], 1
    %1111 = vsyncpa [#allocation15], 1
    %1112 = vsyncpa [#allocation18], 1
    %1113 = vsyncpa [#allocation4], 1

</llo_original>
